<compile_context>
chip_gen: v7x
topology: tpu7x:2x2x1
jax: 0.10.0
libtpu: 0.0.40
codegen_flags: <defaults>
</compile_context>

<pallas_src>
import numpy as np
import jax
import jax.numpy as jnp
from jax import lax
from jax.experimental import pallas as pl
from jax.experimental.pallas import tpu as pltpu  # noqa: F401  (TPU backend assumed)

# ----------------------------- config ---------------------------------------
B = 2            # batch
T = 8            # (padded) question length
VOCAB = 50       # embedding_tokens
EMB = 32         # word-vector dim (embedding_weights.size(1))
RNN_H = 32       # per-direction LSTM hidden  -> question_features = 2*RNN_H
Q_FEAT = 2 * RNN_H
C = 64           # vision channels (output_features)
HW = 4           # spatial side; S = HW*HW
S = HW * HW
MID = 32         # attention mid_features
G = 2            # glimpses
MLP_IN = G * C + Q_FEAT
MLP_MID = 128    # GroupMLP mid_features
MLP_OUT = 64     # embedding_size
GROUPS = 8
MID_G = MLP_MID // GROUPS
OUT_G = MLP_OUT // GROUPS


# ----------------------------- fused kernel ----------------------------------
def fused_kernel(emb_ref, mask_ref, v_ref,
                 wih_ref, whh_ref, bl_ref,
                 wv_ref, wq_ref, bq_ref, wx_ref, bx_ref,
                 w1a_ref, w1b_ref, b1_ref, w2_ref, b2_ref,
                 out_ref):
    H2 = 2 * RNN_H   # fused (fwd|bwd) state width == Q_FEAT

    # ---------------- BiLSTM ----------------
    # Hoisted input projection: one matmul covers all timesteps, both directions,
    # bias folded in.  emb rows are (t, b) major; columns are [emb_t | emb_{T-1-t}].
    x = emb_ref[...]                                                   # (T*B, 2*EMB)
    gx = jnp.dot(x, wih_ref[...],
                 preferred_element_type=jnp.float32) + bl_ref[...]     # (T*B, 8H)
    masks = mask_ref[...]                                              # (T*B, 2H) float
    w_hh = whh_ref[...]                                                # (2H, 8H)

    h = jnp.zeros((B, H2), jnp.float32)   # [h_fwd | h_bwd]
    c = jnp.zeros((B, H2), jnp.float32)   # [c_fwd | c_bwd]
    # Static unroll over T; per step a single (B,2H)x(2H,8H) MXU matmul.
    # Masking past each sequence length reproduces pack_padded_sequence semantics.
    for t in range(T):
        gates = gx[t * B:(t + 1) * B, :] + jnp.dot(
            h, w_hh, preferred_element_type=jnp.float32)               # (B, 8H)
        i = jax.nn.sigmoid(gates[:, 0 * H2:1 * H2])
        f = jax.nn.sigmoid(gates[:, 1 * H2:2 * H2])
        g = jnp.tanh(gates[:, 2 * H2:3 * H2])
        o = jax.nn.sigmoid(gates[:, 3 * H2:4 * H2])
        c_new = f * c + i * g
        h_new = o * jnp.tanh(c_new)
        keep = masks[t * B:(t + 1) * B, :] > 0.5
        h = jnp.where(keep, h_new, h)
        c = jnp.where(keep, c_new, c)
    # Seq2SeqRNN returns the concatenated final *cell* states; our state layout
    # [c_fwd | c_bwd] is already exactly that.
    q = c                                                              # (B, Q_FEAT)

    # ---------------- Attention ----------------
    v = v_ref[...]                                                     # (B*S, C)
    # F.normalize(v, p=2, dim=channels) per spatial position.
    norm = jnp.sqrt(jnp.sum(v * v, axis=-1, keepdims=True))
    vn = v / jnp.maximum(norm, 1e-12)
    # 1x1 conv over channels == matmul, done for the whole batch at once.
    vm = jnp.dot(vn, wv_ref[...], preferred_element_type=jnp.float32)  # (B*S, MID)
    qm = jnp.dot(q, wq_ref[...],
                 preferred_element_type=jnp.float32) + bq_ref[...]     # (B, MID)
    wx = wx_ref[...]
    bx = bx_ref[...]

    att_rows = []
    for b in range(B):   # static, B=2: per-batch softmax over spatial positions
        vm_b = vm[b * S:(b + 1) * S, :]                                # (S, MID)
        vn_b = vn[b * S:(b + 1) * S, :]                                # (S, C)
        xb = jnp.maximum(vm_b + qm[b:b + 1, :], 0.0)                   # (S, MID)
        logits = jnp.dot(xb, wx,
                         preferred_element_type=jnp.float32) + bx      # (S, G)
        mmax = jnp.max(logits, axis=0, keepdims=True)
        e = jnp.exp(logits - mmax)
        a = e / jnp.sum(e, axis=0, keepdims=True)                      # (S, G)
        # weighted mean over spatial positions as one MXU matmul: a^T @ v -> (G, C)
        w_b = lax.dot_general(a, vn_b, (((0,), (0,)), ((), ())),
                              preferred_element_type=jnp.float32)      # (G, C)
        # glimpse-major flatten to a single lane-dense row (1, G*C)
        att_rows.append(jnp.concatenate([w_b[0:1, :], w_b[1:2, :]], axis=1))
    v_att = jnp.concatenate(att_rows, axis=0)                          # (B, G*C)

    # ---------------- GroupMLP ----------------
    # fc1 on the split inputs avoids materializing concat([v_att, q]); fc2 is the
    # grouped 1x1 conv expressed as one block-diagonal matmul.
    h1 = jnp.maximum(
        jnp.dot(v_att, w1a_ref[...], preferred_element_type=jnp.float32)
        + jnp.dot(q, w1b_ref[...], preferred_element_type=jnp.float32)
        + b1_ref[...], 0.0)                                            # (B, MLP_MID)
    out_ref[...] = (jnp.dot(h1, w2_ref[...], preferred_element_type=jnp.float32)
                    + b2_ref[...])                                     # (B, MLP_OUT)


# ----------------------------- wrapper ---------------------------------------
@jax.jit
def stacked_attention_embedding(v_nchw, q_tok, q_len, PF):
    # embedding lookup (gather); dropout layers are identity (eval mode)
    emb = jnp.take(PF['emb'], q_tok, axis=0).astype(jnp.float32)       # (B, T, EMB)
    emb_t = jnp.transpose(emb, (1, 0, 2))                              # (T, B, EMB)
    # columns [x_t | x_{T-1-t}] so both directions share one hoisted projection
    emb_fb = jnp.concatenate([emb_t, emb_t[::-1]], axis=-1)            # (T, B, 2E)
    emb_fb = emb_fb.reshape(T * B, 2 * EMB)

    # precomputed float masks (T*B, 2H): fwd half uses t < len, bwd half T-1-t < len
    lens = q_len.astype(jnp.int32)
    t_idx = jnp.arange(T, dtype=jnp.int32)
    mf = (t_idx[:, None] < lens[None, :]).astype(jnp.float32)          # (T, B)
    mb = ((T - 1 - t_idx)[:, None] < lens[None, :]).astype(jnp.float32)
    masks = jnp.concatenate(
        [jnp.broadcast_to(mf[:, :, None], (T, B, RNN_H)),
         jnp.broadcast_to(mb[:, :, None], (T, B, RNN_H))], axis=-1)
    masks = masks.reshape(T * B, 2 * RNN_H)

    # vision layout: NCHW -> (B*S, C), channels on the lane axis
    v2d = jnp.transpose(v_nchw.reshape(B, C, S), (0, 2, 1)).reshape(B * S, C)

    # single fused kernel call, no grid: everything is resident in VMEM.
    return pl.pallas_call(
        fused_kernel,
        out_shape=jax.ShapeDtypeStruct((B, MLP_OUT), jnp.float32),
    )(emb_fb, masks, v2d,
      PF['w_ih'], PF['w_hh'], PF['b_lstm'],
      PF['wv'], PF['wq'], PF['bq'], PF['wx'], PF['bx'],
      PF['w1a'], PF['w1b'], PF['b1'], PF['w2_bd'], PF['b2'])


# ----------------------- parameter preparation (once) -------------------------
def prepare_fused_params(P):
    """Build the fused/reordered weights consumed by the kernel (done once)."""
    H = RNN_H

    def fuse_w(w_f, w_b):
        # (R,4H),(R,4H) -> (2R,8H) block-diagonal over directions with gate blocks
        # interleaved as [i_f,i_b,f_f,f_b,g_f,g_b,o_f,o_b].
        R = w_f.shape[0]
        wf = w_f.reshape(R, 4, H)
        wb = w_b.reshape(R, 4, H)
        top = jnp.stack([wf, jnp.zeros_like(wf)], axis=2).reshape(R, 8 * H)
        bot = jnp.stack([jnp.zeros_like(wb), wb], axis=2).reshape(R, 8 * H)
        return jnp.concatenate([top, bot], axis=0)

    def fuse_b(b_f, b_b):
        return jnp.stack([b_f.reshape(4, H), b_b.reshape(4, H)], axis=1).reshape(1, 8 * H)

    # grouped 1x1 conv -> block-diagonal (MLP_MID, MLP_OUT) matrix
    eye = jnp.eye(GROUPS, dtype=jnp.float32)
    w2_bd = (P['w2'][:, None, :, :] * eye[:, :, None, None])
    w2_bd = jnp.transpose(w2_bd, (0, 2, 1, 3)).reshape(MLP_MID, MLP_OUT)

    return {
        'emb': P['emb'],
        'w_ih': fuse_w(P['w_ih_f'], P['w_ih_b']),      # (2*EMB, 8H)
        'w_hh': fuse_w(P['w_hh_f'], P['w_hh_b']),      # (2H, 8H)
        'b_lstm': fuse_b(P['b_f'], P['b_b']),          # (1, 8H)
        'wv': P['wv'], 'wq': P['wq'], 'bq': P['bq'],
        'wx': P['wx'], 'bx': P['bx'],
        'w1a': P['w1'][:G * C], 'w1b': P['w1'][G * C:], 'b1': P['b1'],
        'w2_bd': w2_bd, 'b2': P['b2'],
    }


# ----------------------------- params ----------------------------------------
def init_params(key):
    ks = jax.random.split(key, 16)

    def xavier(k, shape):
        bound = float(np.sqrt(6.0 / (shape[0] + shape[1])))
        return jax.random.uniform(k, shape, jnp.float32, -bound, bound)

    def unif(k, shape, bound):
        return jax.random.uniform(k, shape, jnp.float32, -bound, bound)

    P = {}
    emb = 0.1 * jax.random.normal(ks[0], (VOCAB, EMB), jnp.float32)
    P['emb'] = emb.at[0].set(0.0)                     # padding_idx = 0
    r = 1.0 / float(np.sqrt(RNN_H))                   # PyTorch LSTM default init
    P['w_ih_f'] = unif(ks[1], (EMB, 4 * RNN_H), r)
    P['w_hh_f'] = unif(ks[2], (RNN_H, 4 * RNN_H), r)
    P['b_f'] = unif(ks[3], (1, 4 * RNN_H), r)         # b_ih + b_hh folded
    P['w_ih_b'] = unif(ks[4], (EMB, 4 * RNN_H), r)
    P['w_hh_b'] = unif(ks[5], (RNN_H, 4 * RNN_H), r)
    P['b_b'] = unif(ks[6], (1, 4 * RNN_H), r)
    # Attention: v_conv (1x1, no bias), q_lin, x_conv (1x1) -- xavier, zero bias
    P['wv'] = xavier(ks[7], (C, MID))
    P['wq'] = xavier(ks[8], (Q_FEAT, MID))
    P['bq'] = jnp.zeros((1, MID), jnp.float32)
    P['wx'] = xavier(ks[9], (MID, G))
    P['bx'] = jnp.zeros((1, G), jnp.float32)
    # GroupMLP: Conv1d layers keep PyTorch default init (xavier loop skips Conv1d)
    b1 = 1.0 / float(np.sqrt(MLP_IN))
    P['w1'] = unif(ks[10], (MLP_IN, MLP_MID), b1)
    P['b1'] = unif(ks[11], (1, MLP_MID), b1)
    b2 = 1.0 / float(np.sqrt(MID_G))
    P['w2'] = unif(ks[12], (GROUPS, MID_G, OUT_G), b2)
    P['b2'] = unif(ks[13], (1, MLP_OUT), b2)
    return P


# ----------------------------- pure-JAX reference -----------------------------
def _lstm_cell(x_t, h, c, w_ih, w_hh, b, mask, H):
    gates = (jnp.dot(x_t, w_ih, preferred_element_type=jnp.float32)
             + jnp.dot(h, w_hh, preferred_element_type=jnp.float32) + b)
    i = jax.nn.sigmoid(gates[:, 0 * H:1 * H])
    f = jax.nn.sigmoid(gates[:, 1 * H:2 * H])
    g = jnp.tanh(gates[:, 2 * H:3 * H])
    o = jax.nn.sigmoid(gates[:, 3 * H:4 * H])
    c_new = f * c + i * g
    h_new = o * jnp.tanh(c_new)
    h = jnp.where(mask, h_new, h)
    c = jnp.where(mask, c_new, c)
    return h, c


def reference_forward(v_nchw, q_tok, q_len, P):
    emb = jnp.take(P['emb'], q_tok, axis=0).astype(jnp.float32)
    lens = q_len.astype(jnp.int32)
    H = RNN_H
    hf = cf = hb = cb = jnp.zeros((B, H), jnp.float32)
    for t in range(T):
        hf, cf = _lstm_cell(emb[:, t], hf, cf, P['w_ih_f'], P['w_hh_f'],
                            P['b_f'], (lens > t)[:, None], H)
        tb = T - 1 - t
        hb, cb = _lstm_cell(emb[:, tb], hb, cb, P['w_ih_b'], P['w_hh_b'],
                            P['b_b'], (lens > tb)[:, None], H)
    q = jnp.concatenate([cf, cb], axis=1)
    v = jnp.transpose(v_nchw.reshape(B, C, S), (0, 2, 1))
    v = v / jnp.maximum(jnp.sqrt(jnp.sum(v * v, axis=-1, keepdims=True)), 1e-12)
    vm = v @ P['wv']
    qm = q @ P['wq'] + P['bq']
    x = jnp.maximum(vm + qm[:, None, :], 0.0)
    logits = x @ P['wx'] + P['bx']
    a = jax.nn.softmax(logits, axis=1)
    w = jnp.einsum('bsg,bsc->bgc', a, v).reshape(B, G * C)
    comb = jnp.concatenate([w, q], axis=1)
    h1 = jnp.maximum(comb @ P['w1'] + P['b1'], 0.0)
    hg = h1.reshape(B, GROUPS, MID_G)
    og = jnp.einsum('bgm,gmo->bgo', hg, P['w2']).reshape(B, MLP_OUT) + P['b2']
    return og


# ----------------------------- main -------------------------------------------
if __name__ == "__main__":
    key = jax.random.PRNGKey(0)
    kp, kv, kq = jax.random.split(key, 3)
    P = init_params(kp)
    PF = prepare_fused_params(P)

    # inputs: v is NCHW like the PyTorch module; q are token ids; q_len sorted desc
    v = jax.random.normal(kv, (B, C, HW, HW), jnp.float32)
    q_len = jnp.array([T, T - 3], dtype=jnp.int32)
    q_tok = jax.random.randint(kq, (B, T), 1, VOCAB)
    pos = jnp.arange(T)[None, :]
    q_tok = jnp.where(pos < q_len[:, None], q_tok, 0).astype(jnp.int32)

    out = stacked_attention_embedding(v, q_tok, q_len, PF)
    out = jax.block_until_ready(out)

    with jax.default_matmul_precision('float32'):
        ref = jax.block_until_ready(reference_forward(v, q_tok, q_len, P))

    assert out.shape == (B, MLP_OUT)
    assert np.all(np.isfinite(np.asarray(out)))
    assert np.allclose(np.asarray(out), np.asarray(ref), rtol=5e-3, atol=5e-4), \
        float(np.abs(np.asarray(out) - np.asarray(ref)).max())
    print("KERNEL_OK")
</pallas_src>

<mosaic_0001>
module attributes {stable_mosaic.version = 11 : i64} {
  func.func @fused_kernel(%arg0: memref<16x64xf32, #tpu.memory_space<vmem>>, %arg1: memref<16x64xf32, #tpu.memory_space<vmem>>, %arg2: memref<32x64xf32, #tpu.memory_space<vmem>>, %arg3: memref<64x256xf32, #tpu.memory_space<vmem>>, %arg4: memref<64x256xf32, #tpu.memory_space<vmem>>, %arg5: memref<1x256xf32, #tpu.memory_space<vmem>>, %arg6: memref<64x32xf32, #tpu.memory_space<vmem>>, %arg7: memref<64x32xf32, #tpu.memory_space<vmem>>, %arg8: memref<1x32xf32, #tpu.memory_space<vmem>>, %arg9: memref<32x2xf32, #tpu.memory_space<vmem>>, %arg10: memref<1x2xf32, #tpu.memory_space<vmem>>, %arg11: memref<128x128xf32, #tpu.memory_space<vmem>>, %arg12: memref<64x128xf32, #tpu.memory_space<vmem>>, %arg13: memref<1x128xf32, #tpu.memory_space<vmem>>, %arg14: memref<128x64xf32, #tpu.memory_space<vmem>>, %arg15: memref<1x64xf32, #tpu.memory_space<vmem>>, %arg16: memref<2x64xf32, #tpu.memory_space<vmem>>) attributes {dimension_semantics = [], scalar_prefetch = 0 : i64, scratch_operands = 0 : i64, tpu.core_type = #tpu.core_type<tc>} {
    %c0 = arith.constant 0 : index
    %c0_0 = arith.constant 0 : index
    %0 = vector.load %arg0[%c0, %c0_0] : memref<16x64xf32, #tpu.memory_space<vmem>>, vector<16x64xf32>
    %c0_1 = arith.constant 0 : index
    %c0_2 = arith.constant 0 : index
    %1 = vector.load %arg3[%c0_1, %c0_2] : memref<64x256xf32, #tpu.memory_space<vmem>>, vector<64x256xf32>
    %cst = arith.constant dense<0.000000e+00> : vector<16x256xf32>
    %2 = tpu.matmul %0, %1, %cst {dimension_numbers = #tpu.dot_dimension_numbers<[1], [0], [0], [1], [0, 0, 1, 1], [], []>} : vector<16x64xf32>, vector<64x256xf32>, vector<16x256xf32> -> vector<16x256xf32>
    %c0_3 = arith.constant 0 : index
    %c0_4 = arith.constant 0 : index
    %3 = vector.load %arg5[%c0_3, %c0_4] : memref<1x256xf32, #tpu.memory_space<vmem>>, vector<1x256xf32>
    %4 = vector.broadcast %3 : vector<1x256xf32> to vector<16x256xf32>
    %5 = arith.addf %2, %4 : vector<16x256xf32>
    %c0_5 = arith.constant 0 : index
    %c0_6 = arith.constant 0 : index
    %6 = vector.load %arg1[%c0_5, %c0_6] : memref<16x64xf32, #tpu.memory_space<vmem>>, vector<16x64xf32>
    %c0_7 = arith.constant 0 : index
    %c0_8 = arith.constant 0 : index
    %7 = vector.load %arg4[%c0_7, %c0_8] : memref<64x256xf32, #tpu.memory_space<vmem>>, vector<64x256xf32>
    %cst_9 = arith.constant 0.000000e+00 : f32
    %8 = vector.broadcast %cst_9 : f32 to vector<2x64xf32>
    %cst_10 = arith.constant 0.000000e+00 : f32
    %9 = vector.broadcast %cst_10 : f32 to vector<2x64xf32>
    %10 = vector.extract_strided_slice %5 {offsets = [0, 0], sizes = [2, 256], strides = [1, 1]} : vector<16x256xf32> to vector<2x256xf32>
    %cst_11 = arith.constant dense<0.000000e+00> : vector<2x256xf32>
    %11 = tpu.matmul %8, %7, %cst_11 {dimension_numbers = #tpu.dot_dimension_numbers<[1], [0], [0], [1], [0, 0, 1, 1], [], []>} : vector<2x64xf32>, vector<64x256xf32>, vector<2x256xf32> -> vector<2x256xf32>
    %12 = arith.addf %10, %11 : vector<2x256xf32>
    %13 = vector.extract_strided_slice %12 {offsets = [0, 0], sizes = [2, 64], strides = [1, 1]} : vector<2x256xf32> to vector<2x64xf32>
    %14 = arith.negf %13 : vector<2x64xf32>
    %15 = math.exp %14 : vector<2x64xf32>
    %cst_12 = arith.constant 1.000000e+00 : f32
    %16 = vector.broadcast %cst_12 : f32 to vector<2x64xf32>
    %17 = arith.addf %16, %15 : vector<2x64xf32>
    %18 = arith.divf %16, %17 : vector<2x64xf32>
    %19 = vector.extract_strided_slice %12 {offsets = [0, 64], sizes = [2, 64], strides = [1, 1]} : vector<2x256xf32> to vector<2x64xf32>
    %20 = arith.negf %19 : vector<2x64xf32>
    %21 = math.exp %20 : vector<2x64xf32>
    %cst_13 = arith.constant 1.000000e+00 : f32
    %22 = vector.broadcast %cst_13 : f32 to vector<2x64xf32>
    %23 = arith.addf %22, %21 : vector<2x64xf32>
    %24 = arith.divf %22, %23 : vector<2x64xf32>
    %25 = vector.extract_strided_slice %12 {offsets = [0, 128], sizes = [2, 64], strides = [1, 1]} : vector<2x256xf32> to vector<2x64xf32>
    %26 = math.tanh %25 : vector<2x64xf32>
    %27 = vector.extract_strided_slice %12 {offsets = [0, 192], sizes = [2, 64], strides = [1, 1]} : vector<2x256xf32> to vector<2x64xf32>
    %28 = arith.negf %27 : vector<2x64xf32>
    %29 = math.exp %28 : vector<2x64xf32>
    %cst_14 = arith.constant 1.000000e+00 : f32
    %30 = vector.broadcast %cst_14 : f32 to vector<2x64xf32>
    %31 = arith.addf %30, %29 : vector<2x64xf32>
    %32 = arith.divf %30, %31 : vector<2x64xf32>
    %33 = arith.mulf %24, %9 : vector<2x64xf32>
    %34 = arith.mulf %18, %26 : vector<2x64xf32>
    %35 = arith.addf %33, %34 : vector<2x64xf32>
    %36 = math.tanh %35 : vector<2x64xf32>
    %37 = arith.mulf %32, %36 : vector<2x64xf32>
    %38 = vector.extract_strided_slice %6 {offsets = [0, 0], sizes = [2, 64], strides = [1, 1]} : vector<16x64xf32> to vector<2x64xf32>
    %cst_15 = arith.constant 5.000000e-01 : f32
    %39 = vector.broadcast %cst_15 : f32 to vector<2x64xf32>
    %40 = arith.cmpf ogt, %38, %39 : vector<2x64xf32>
    %41 = arith.select %40, %37, %8 : vector<2x64xi1>, vector<2x64xf32>
    %42 = arith.select %40, %35, %9 : vector<2x64xi1>, vector<2x64xf32>
    %43 = vector.extract_strided_slice %5 {offsets = [2, 0], sizes = [2, 256], strides = [1, 1]} : vector<16x256xf32> to vector<2x256xf32>
    %cst_16 = arith.constant dense<0.000000e+00> : vector<2x256xf32>
    %44 = tpu.matmul %41, %7, %cst_16 {dimension_numbers = #tpu.dot_dimension_numbers<[1], [0], [0], [1], [0, 0, 1, 1], [], []>} : vector<2x64xf32>, vector<64x256xf32>, vector<2x256xf32> -> vector<2x256xf32>
    %45 = arith.addf %43, %44 : vector<2x256xf32>
    %46 = vector.extract_strided_slice %45 {offsets = [0, 0], sizes = [2, 64], strides = [1, 1]} : vector<2x256xf32> to vector<2x64xf32>
    %47 = arith.negf %46 : vector<2x64xf32>
    %48 = math.exp %47 : vector<2x64xf32>
    %cst_17 = arith.constant 1.000000e+00 : f32
    %49 = vector.broadcast %cst_17 : f32 to vector<2x64xf32>
    %50 = arith.addf %49, %48 : vector<2x64xf32>
    %51 = arith.divf %49, %50 : vector<2x64xf32>
    %52 = vector.extract_strided_slice %45 {offsets = [0, 64], sizes = [2, 64], strides = [1, 1]} : vector<2x256xf32> to vector<2x64xf32>
    %53 = arith.negf %52 : vector<2x64xf32>
    %54 = math.exp %53 : vector<2x64xf32>
    %cst_18 = arith.constant 1.000000e+00 : f32
    %55 = vector.broadcast %cst_18 : f32 to vector<2x64xf32>
    %56 = arith.addf %55, %54 : vector<2x64xf32>
    %57 = arith.divf %55, %56 : vector<2x64xf32>
    %58 = vector.extract_strided_slice %45 {offsets = [0, 128], sizes = [2, 64], strides = [1, 1]} : vector<2x256xf32> to vector<2x64xf32>
    %59 = math.tanh %58 : vector<2x64xf32>
    %60 = vector.extract_strided_slice %45 {offsets = [0, 192], sizes = [2, 64], strides = [1, 1]} : vector<2x256xf32> to vector<2x64xf32>
    %61 = arith.negf %60 : vector<2x64xf32>
    %62 = math.exp %61 : vector<2x64xf32>
    %cst_19 = arith.constant 1.000000e+00 : f32
    %63 = vector.broadcast %cst_19 : f32 to vector<2x64xf32>
    %64 = arith.addf %63, %62 : vector<2x64xf32>
    %65 = arith.divf %63, %64 : vector<2x64xf32>
    %66 = arith.mulf %57, %42 : vector<2x64xf32>
    %67 = arith.mulf %51, %59 : vector<2x64xf32>
    %68 = arith.addf %66, %67 : vector<2x64xf32>
    %69 = math.tanh %68 : vector<2x64xf32>
    %70 = arith.mulf %65, %69 : vector<2x64xf32>
    %71 = vector.extract_strided_slice %6 {offsets = [2, 0], sizes = [2, 64], strides = [1, 1]} : vector<16x64xf32> to vector<2x64xf32>
    %cst_20 = arith.constant 5.000000e-01 : f32
    %72 = vector.broadcast %cst_20 : f32 to vector<2x64xf32>
    %73 = arith.cmpf ogt, %71, %72 : vector<2x64xf32>
    %74 = arith.select %73, %70, %41 : vector<2x64xi1>, vector<2x64xf32>
    %75 = arith.select %73, %68, %42 : vector<2x64xi1>, vector<2x64xf32>
    %76 = vector.extract_strided_slice %5 {offsets = [4, 0], sizes = [2, 256], strides = [1, 1]} : vector<16x256xf32> to vector<2x256xf32>
    %cst_21 = arith.constant dense<0.000000e+00> : vector<2x256xf32>
    %77 = tpu.matmul %74, %7, %cst_21 {dimension_numbers = #tpu.dot_dimension_numbers<[1], [0], [0], [1], [0, 0, 1, 1], [], []>} : vector<2x64xf32>, vector<64x256xf32>, vector<2x256xf32> -> vector<2x256xf32>
    %78 = arith.addf %76, %77 : vector<2x256xf32>
    %79 = vector.extract_strided_slice %78 {offsets = [0, 0], sizes = [2, 64], strides = [1, 1]} : vector<2x256xf32> to vector<2x64xf32>
    %80 = arith.negf %79 : vector<2x64xf32>
    %81 = math.exp %80 : vector<2x64xf32>
    %cst_22 = arith.constant 1.000000e+00 : f32
    %82 = vector.broadcast %cst_22 : f32 to vector<2x64xf32>
    %83 = arith.addf %82, %81 : vector<2x64xf32>
    %84 = arith.divf %82, %83 : vector<2x64xf32>
    %85 = vector.extract_strided_slice %78 {offsets = [0, 64], sizes = [2, 64], strides = [1, 1]} : vector<2x256xf32> to vector<2x64xf32>
    %86 = arith.negf %85 : vector<2x64xf32>
    %87 = math.exp %86 : vector<2x64xf32>
    %cst_23 = arith.constant 1.000000e+00 : f32
    %88 = vector.broadcast %cst_23 : f32 to vector<2x64xf32>
    %89 = arith.addf %88, %87 : vector<2x64xf32>
    %90 = arith.divf %88, %89 : vector<2x64xf32>
    %91 = vector.extract_strided_slice %78 {offsets = [0, 128], sizes = [2, 64], strides = [1, 1]} : vector<2x256xf32> to vector<2x64xf32>
    %92 = math.tanh %91 : vector<2x64xf32>
    %93 = vector.extract_strided_slice %78 {offsets = [0, 192], sizes = [2, 64], strides = [1, 1]} : vector<2x256xf32> to vector<2x64xf32>
    %94 = arith.negf %93 : vector<2x64xf32>
    %95 = math.exp %94 : vector<2x64xf32>
    %cst_24 = arith.constant 1.000000e+00 : f32
    %96 = vector.broadcast %cst_24 : f32 to vector<2x64xf32>
    %97 = arith.addf %96, %95 : vector<2x64xf32>
    %98 = arith.divf %96, %97 : vector<2x64xf32>
    %99 = arith.mulf %90, %75 : vector<2x64xf32>
    %100 = arith.mulf %84, %92 : vector<2x64xf32>
    %101 = arith.addf %99, %100 : vector<2x64xf32>
    %102 = math.tanh %101 : vector<2x64xf32>
    %103 = arith.mulf %98, %102 : vector<2x64xf32>
    %104 = vector.extract_strided_slice %6 {offsets = [4, 0], sizes = [2, 64], strides = [1, 1]} : vector<16x64xf32> to vector<2x64xf32>
    %cst_25 = arith.constant 5.000000e-01 : f32
    %105 = vector.broadcast %cst_25 : f32 to vector<2x64xf32>
    %106 = arith.cmpf ogt, %104, %105 : vector<2x64xf32>
    %107 = arith.select %106, %103, %74 : vector<2x64xi1>, vector<2x64xf32>
    %108 = arith.select %106, %101, %75 : vector<2x64xi1>, vector<2x64xf32>
    %109 = vector.extract_strided_slice %5 {offsets = [6, 0], sizes = [2, 256], strides = [1, 1]} : vector<16x256xf32> to vector<2x256xf32>
    %cst_26 = arith.constant dense<0.000000e+00> : vector<2x256xf32>
    %110 = tpu.matmul %107, %7, %cst_26 {dimension_numbers = #tpu.dot_dimension_numbers<[1], [0], [0], [1], [0, 0, 1, 1], [], []>} : vector<2x64xf32>, vector<64x256xf32>, vector<2x256xf32> -> vector<2x256xf32>
    %111 = arith.addf %109, %110 : vector<2x256xf32>
    %112 = vector.extract_strided_slice %111 {offsets = [0, 0], sizes = [2, 64], strides = [1, 1]} : vector<2x256xf32> to vector<2x64xf32>
    %113 = arith.negf %112 : vector<2x64xf32>
    %114 = math.exp %113 : vector<2x64xf32>
    %cst_27 = arith.constant 1.000000e+00 : f32
    %115 = vector.broadcast %cst_27 : f32 to vector<2x64xf32>
    %116 = arith.addf %115, %114 : vector<2x64xf32>
    %117 = arith.divf %115, %116 : vector<2x64xf32>
    %118 = vector.extract_strided_slice %111 {offsets = [0, 64], sizes = [2, 64], strides = [1, 1]} : vector<2x256xf32> to vector<2x64xf32>
    %119 = arith.negf %118 : vector<2x64xf32>
    %120 = math.exp %119 : vector<2x64xf32>
    %cst_28 = arith.constant 1.000000e+00 : f32
    %121 = vector.broadcast %cst_28 : f32 to vector<2x64xf32>
    %122 = arith.addf %121, %120 : vector<2x64xf32>
    %123 = arith.divf %121, %122 : vector<2x64xf32>
    %124 = vector.extract_strided_slice %111 {offsets = [0, 128], sizes = [2, 64], strides = [1, 1]} : vector<2x256xf32> to vector<2x64xf32>
    %125 = math.tanh %124 : vector<2x64xf32>
    %126 = vector.extract_strided_slice %111 {offsets = [0, 192], sizes = [2, 64], strides = [1, 1]} : vector<2x256xf32> to vector<2x64xf32>
    %127 = arith.negf %126 : vector<2x64xf32>
    %128 = math.exp %127 : vector<2x64xf32>
    %cst_29 = arith.constant 1.000000e+00 : f32
    %129 = vector.broadcast %cst_29 : f32 to vector<2x64xf32>
    %130 = arith.addf %129, %128 : vector<2x64xf32>
    %131 = arith.divf %129, %130 : vector<2x64xf32>
    %132 = arith.mulf %123, %108 : vector<2x64xf32>
    %133 = arith.mulf %117, %125 : vector<2x64xf32>
    %134 = arith.addf %132, %133 : vector<2x64xf32>
    %135 = math.tanh %134 : vector<2x64xf32>
    %136 = arith.mulf %131, %135 : vector<2x64xf32>
    %137 = vector.extract_strided_slice %6 {offsets = [6, 0], sizes = [2, 64], strides = [1, 1]} : vector<16x64xf32> to vector<2x64xf32>
    %cst_30 = arith.constant 5.000000e-01 : f32
    %138 = vector.broadcast %cst_30 : f32 to vector<2x64xf32>
    %139 = arith.cmpf ogt, %137, %138 : vector<2x64xf32>
    %140 = arith.select %139, %136, %107 : vector<2x64xi1>, vector<2x64xf32>
    %141 = arith.select %139, %134, %108 : vector<2x64xi1>, vector<2x64xf32>
    %142 = vector.extract_strided_slice %5 {offsets = [8, 0], sizes = [2, 256], strides = [1, 1]} : vector<16x256xf32> to vector<2x256xf32>
    %cst_31 = arith.constant dense<0.000000e+00> : vector<2x256xf32>
    %143 = tpu.matmul %140, %7, %cst_31 {dimension_numbers = #tpu.dot_dimension_numbers<[1], [0], [0], [1], [0, 0, 1, 1], [], []>} : vector<2x64xf32>, vector<64x256xf32>, vector<2x256xf32> -> vector<2x256xf32>
    %144 = arith.addf %142, %143 : vector<2x256xf32>
    %145 = vector.extract_strided_slice %144 {offsets = [0, 0], sizes = [2, 64], strides = [1, 1]} : vector<2x256xf32> to vector<2x64xf32>
    %146 = arith.negf %145 : vector<2x64xf32>
    %147 = math.exp %146 : vector<2x64xf32>
    %cst_32 = arith.constant 1.000000e+00 : f32
    %148 = vector.broadcast %cst_32 : f32 to vector<2x64xf32>
    %149 = arith.addf %148, %147 : vector<2x64xf32>
    %150 = arith.divf %148, %149 : vector<2x64xf32>
    %151 = vector.extract_strided_slice %144 {offsets = [0, 64], sizes = [2, 64], strides = [1, 1]} : vector<2x256xf32> to vector<2x64xf32>
    %152 = arith.negf %151 : vector<2x64xf32>
    %153 = math.exp %152 : vector<2x64xf32>
    %cst_33 = arith.constant 1.000000e+00 : f32
    %154 = vector.broadcast %cst_33 : f32 to vector<2x64xf32>
    %155 = arith.addf %154, %153 : vector<2x64xf32>
    %156 = arith.divf %154, %155 : vector<2x64xf32>
    %157 = vector.extract_strided_slice %144 {offsets = [0, 128], sizes = [2, 64], strides = [1, 1]} : vector<2x256xf32> to vector<2x64xf32>
    %158 = math.tanh %157 : vector<2x64xf32>
    %159 = vector.extract_strided_slice %144 {offsets = [0, 192], sizes = [2, 64], strides = [1, 1]} : vector<2x256xf32> to vector<2x64xf32>
    %160 = arith.negf %159 : vector<2x64xf32>
    %161 = math.exp %160 : vector<2x64xf32>
    %cst_34 = arith.constant 1.000000e+00 : f32
    %162 = vector.broadcast %cst_34 : f32 to vector<2x64xf32>
    %163 = arith.addf %162, %161 : vector<2x64xf32>
    %164 = arith.divf %162, %163 : vector<2x64xf32>
    %165 = arith.mulf %156, %141 : vector<2x64xf32>
    %166 = arith.mulf %150, %158 : vector<2x64xf32>
    %167 = arith.addf %165, %166 : vector<2x64xf32>
    %168 = math.tanh %167 : vector<2x64xf32>
    %169 = arith.mulf %164, %168 : vector<2x64xf32>
    %170 = vector.extract_strided_slice %6 {offsets = [8, 0], sizes = [2, 64], strides = [1, 1]} : vector<16x64xf32> to vector<2x64xf32>
    %cst_35 = arith.constant 5.000000e-01 : f32
    %171 = vector.broadcast %cst_35 : f32 to vector<2x64xf32>
    %172 = arith.cmpf ogt, %170, %171 : vector<2x64xf32>
    %173 = arith.select %172, %169, %140 : vector<2x64xi1>, vector<2x64xf32>
    %174 = arith.select %172, %167, %141 : vector<2x64xi1>, vector<2x64xf32>
    %175 = vector.extract_strided_slice %5 {offsets = [10, 0], sizes = [2, 256], strides = [1, 1]} : vector<16x256xf32> to vector<2x256xf32>
    %cst_36 = arith.constant dense<0.000000e+00> : vector<2x256xf32>
    %176 = tpu.matmul %173, %7, %cst_36 {dimension_numbers = #tpu.dot_dimension_numbers<[1], [0], [0], [1], [0, 0, 1, 1], [], []>} : vector<2x64xf32>, vector<64x256xf32>, vector<2x256xf32> -> vector<2x256xf32>
    %177 = arith.addf %175, %176 : vector<2x256xf32>
    %178 = vector.extract_strided_slice %177 {offsets = [0, 0], sizes = [2, 64], strides = [1, 1]} : vector<2x256xf32> to vector<2x64xf32>
    %179 = arith.negf %178 : vector<2x64xf32>
    %180 = math.exp %179 : vector<2x64xf32>
    %cst_37 = arith.constant 1.000000e+00 : f32
    %181 = vector.broadcast %cst_37 : f32 to vector<2x64xf32>
    %182 = arith.addf %181, %180 : vector<2x64xf32>
    %183 = arith.divf %181, %182 : vector<2x64xf32>
    %184 = vector.extract_strided_slice %177 {offsets = [0, 64], sizes = [2, 64], strides = [1, 1]} : vector<2x256xf32> to vector<2x64xf32>
    %185 = arith.negf %184 : vector<2x64xf32>
    %186 = math.exp %185 : vector<2x64xf32>
    %cst_38 = arith.constant 1.000000e+00 : f32
    %187 = vector.broadcast %cst_38 : f32 to vector<2x64xf32>
    %188 = arith.addf %187, %186 : vector<2x64xf32>
    %189 = arith.divf %187, %188 : vector<2x64xf32>
    %190 = vector.extract_strided_slice %177 {offsets = [0, 128], sizes = [2, 64], strides = [1, 1]} : vector<2x256xf32> to vector<2x64xf32>
    %191 = math.tanh %190 : vector<2x64xf32>
    %192 = vector.extract_strided_slice %177 {offsets = [0, 192], sizes = [2, 64], strides = [1, 1]} : vector<2x256xf32> to vector<2x64xf32>
    %193 = arith.negf %192 : vector<2x64xf32>
    %194 = math.exp %193 : vector<2x64xf32>
    %cst_39 = arith.constant 1.000000e+00 : f32
    %195 = vector.broadcast %cst_39 : f32 to vector<2x64xf32>
    %196 = arith.addf %195, %194 : vector<2x64xf32>
    %197 = arith.divf %195, %196 : vector<2x64xf32>
    %198 = arith.mulf %189, %174 : vector<2x64xf32>
    %199 = arith.mulf %183, %191 : vector<2x64xf32>
    %200 = arith.addf %198, %199 : vector<2x64xf32>
    %201 = math.tanh %200 : vector<2x64xf32>
    %202 = arith.mulf %197, %201 : vector<2x64xf32>
    %203 = vector.extract_strided_slice %6 {offsets = [10, 0], sizes = [2, 64], strides = [1, 1]} : vector<16x64xf32> to vector<2x64xf32>
    %cst_40 = arith.constant 5.000000e-01 : f32
    %204 = vector.broadcast %cst_40 : f32 to vector<2x64xf32>
    %205 = arith.cmpf ogt, %203, %204 : vector<2x64xf32>
    %206 = arith.select %205, %202, %173 : vector<2x64xi1>, vector<2x64xf32>
    %207 = arith.select %205, %200, %174 : vector<2x64xi1>, vector<2x64xf32>
    %208 = vector.extract_strided_slice %5 {offsets = [12, 0], sizes = [2, 256], strides = [1, 1]} : vector<16x256xf32> to vector<2x256xf32>
    %cst_41 = arith.constant dense<0.000000e+00> : vector<2x256xf32>
    %209 = tpu.matmul %206, %7, %cst_41 {dimension_numbers = #tpu.dot_dimension_numbers<[1], [0], [0], [1], [0, 0, 1, 1], [], []>} : vector<2x64xf32>, vector<64x256xf32>, vector<2x256xf32> -> vector<2x256xf32>
    %210 = arith.addf %208, %209 : vector<2x256xf32>
    %211 = vector.extract_strided_slice %210 {offsets = [0, 0], sizes = [2, 64], strides = [1, 1]} : vector<2x256xf32> to vector<2x64xf32>
    %212 = arith.negf %211 : vector<2x64xf32>
    %213 = math.exp %212 : vector<2x64xf32>
    %cst_42 = arith.constant 1.000000e+00 : f32
    %214 = vector.broadcast %cst_42 : f32 to vector<2x64xf32>
    %215 = arith.addf %214, %213 : vector<2x64xf32>
    %216 = arith.divf %214, %215 : vector<2x64xf32>
    %217 = vector.extract_strided_slice %210 {offsets = [0, 64], sizes = [2, 64], strides = [1, 1]} : vector<2x256xf32> to vector<2x64xf32>
    %218 = arith.negf %217 : vector<2x64xf32>
    %219 = math.exp %218 : vector<2x64xf32>
    %cst_43 = arith.constant 1.000000e+00 : f32
    %220 = vector.broadcast %cst_43 : f32 to vector<2x64xf32>
    %221 = arith.addf %220, %219 : vector<2x64xf32>
    %222 = arith.divf %220, %221 : vector<2x64xf32>
    %223 = vector.extract_strided_slice %210 {offsets = [0, 128], sizes = [2, 64], strides = [1, 1]} : vector<2x256xf32> to vector<2x64xf32>
    %224 = math.tanh %223 : vector<2x64xf32>
    %225 = vector.extract_strided_slice %210 {offsets = [0, 192], sizes = [2, 64], strides = [1, 1]} : vector<2x256xf32> to vector<2x64xf32>
    %226 = arith.negf %225 : vector<2x64xf32>
    %227 = math.exp %226 : vector<2x64xf32>
    %cst_44 = arith.constant 1.000000e+00 : f32
    %228 = vector.broadcast %cst_44 : f32 to vector<2x64xf32>
    %229 = arith.addf %228, %227 : vector<2x64xf32>
    %230 = arith.divf %228, %229 : vector<2x64xf32>
    %231 = arith.mulf %222, %207 : vector<2x64xf32>
    %232 = arith.mulf %216, %224 : vector<2x64xf32>
    %233 = arith.addf %231, %232 : vector<2x64xf32>
    %234 = math.tanh %233 : vector<2x64xf32>
    %235 = arith.mulf %230, %234 : vector<2x64xf32>
    %236 = vector.extract_strided_slice %6 {offsets = [12, 0], sizes = [2, 64], strides = [1, 1]} : vector<16x64xf32> to vector<2x64xf32>
    %cst_45 = arith.constant 5.000000e-01 : f32
    %237 = vector.broadcast %cst_45 : f32 to vector<2x64xf32>
    %238 = arith.cmpf ogt, %236, %237 : vector<2x64xf32>
    %239 = arith.select %238, %235, %206 : vector<2x64xi1>, vector<2x64xf32>
    %240 = arith.select %238, %233, %207 : vector<2x64xi1>, vector<2x64xf32>
    %241 = vector.extract_strided_slice %5 {offsets = [14, 0], sizes = [2, 256], strides = [1, 1]} : vector<16x256xf32> to vector<2x256xf32>
    %cst_46 = arith.constant dense<0.000000e+00> : vector<2x256xf32>
    %242 = tpu.matmul %239, %7, %cst_46 {dimension_numbers = #tpu.dot_dimension_numbers<[1], [0], [0], [1], [0, 0, 1, 1], [], []>} : vector<2x64xf32>, vector<64x256xf32>, vector<2x256xf32> -> vector<2x256xf32>
    %243 = arith.addf %241, %242 : vector<2x256xf32>
    %244 = vector.extract_strided_slice %243 {offsets = [0, 0], sizes = [2, 64], strides = [1, 1]} : vector<2x256xf32> to vector<2x64xf32>
    %245 = arith.negf %244 : vector<2x64xf32>
    %246 = math.exp %245 : vector<2x64xf32>
    %cst_47 = arith.constant 1.000000e+00 : f32
    %247 = vector.broadcast %cst_47 : f32 to vector<2x64xf32>
    %248 = arith.addf %247, %246 : vector<2x64xf32>
    %249 = arith.divf %247, %248 : vector<2x64xf32>
    %250 = vector.extract_strided_slice %243 {offsets = [0, 64], sizes = [2, 64], strides = [1, 1]} : vector<2x256xf32> to vector<2x64xf32>
    %251 = arith.negf %250 : vector<2x64xf32>
    %252 = math.exp %251 : vector<2x64xf32>
    %cst_48 = arith.constant 1.000000e+00 : f32
    %253 = vector.broadcast %cst_48 : f32 to vector<2x64xf32>
    %254 = arith.addf %253, %252 : vector<2x64xf32>
    %255 = arith.divf %253, %254 : vector<2x64xf32>
    %256 = vector.extract_strided_slice %243 {offsets = [0, 128], sizes = [2, 64], strides = [1, 1]} : vector<2x256xf32> to vector<2x64xf32>
    %257 = math.tanh %256 : vector<2x64xf32>
    %258 = arith.mulf %255, %240 : vector<2x64xf32>
    %259 = arith.mulf %249, %257 : vector<2x64xf32>
    %260 = arith.addf %258, %259 : vector<2x64xf32>
    %261 = vector.extract_strided_slice %6 {offsets = [14, 0], sizes = [2, 64], strides = [1, 1]} : vector<16x64xf32> to vector<2x64xf32>
    %cst_49 = arith.constant 5.000000e-01 : f32
    %262 = vector.broadcast %cst_49 : f32 to vector<2x64xf32>
    %263 = arith.cmpf ogt, %261, %262 : vector<2x64xf32>
    %264 = arith.select %263, %260, %240 : vector<2x64xi1>, vector<2x64xf32>
    %c0_50 = arith.constant 0 : index
    %c0_51 = arith.constant 0 : index
    %265 = vector.load %arg2[%c0_50, %c0_51] : memref<32x64xf32, #tpu.memory_space<vmem>>, vector<32x64xf32>
    %266 = arith.mulf %265, %265 : vector<32x64xf32>
    %cst_52 = arith.constant dense<0.000000e+00> : vector<32xf32>
    %267 = vector.multi_reduction <add>, %266, %cst_52 [1] : vector<32x64xf32> to vector<32xf32>
    %268 = vector.shape_cast %267 : vector<32xf32> to vector<32x1xf32>
    %269 = math.sqrt %268 : vector<32x1xf32>
    %cst_53 = arith.constant 9.99999996E-13 : f32
    %270 = vector.broadcast %cst_53 : f32 to vector<32x1xf32>
    %271 = arith.maximumf %269, %270 : vector<32x1xf32>
    %272 = vector.broadcast %271 : vector<32x1xf32> to vector<32x64xf32>
    %273 = arith.divf %265, %272 : vector<32x64xf32>
    %c0_54 = arith.constant 0 : index
    %c0_55 = arith.constant 0 : index
    %274 = vector.load %arg6[%c0_54, %c0_55] : memref<64x32xf32, #tpu.memory_space<vmem>>, vector<64x32xf32>
    %cst_56 = arith.constant dense<0.000000e+00> : vector<32x32xf32>
    %275 = tpu.matmul %273, %274, %cst_56 {dimension_numbers = #tpu.dot_dimension_numbers<[1], [0], [0], [1], [0, 0, 1, 1], [], []>} : vector<32x64xf32>, vector<64x32xf32>, vector<32x32xf32> -> vector<32x32xf32>
    %c0_57 = arith.constant 0 : index
    %c0_58 = arith.constant 0 : index
    %276 = vector.load %arg7[%c0_57, %c0_58] : memref<64x32xf32, #tpu.memory_space<vmem>>, vector<64x32xf32>
    %cst_59 = arith.constant dense<0.000000e+00> : vector<2x32xf32>
    %277 = tpu.matmul %264, %276, %cst_59 {dimension_numbers = #tpu.dot_dimension_numbers<[1], [0], [0], [1], [0, 0, 1, 1], [], []>} : vector<2x64xf32>, vector<64x32xf32>, vector<2x32xf32> -> vector<2x32xf32>
    %c0_60 = arith.constant 0 : index
    %c0_61 = arith.constant 0 : index
    %278 = vector.load %arg8[%c0_60, %c0_61] : memref<1x32xf32, #tpu.memory_space<vmem>>, vector<1x32xf32>
    %279 = vector.broadcast %278 : vector<1x32xf32> to vector<2x32xf32>
    %280 = arith.addf %277, %279 : vector<2x32xf32>
    %c0_62 = arith.constant 0 : index
    %c0_63 = arith.constant 0 : index
    %281 = vector.load %arg9[%c0_62, %c0_63] : memref<32x2xf32, #tpu.memory_space<vmem>>, vector<32x2xf32>
    %c0_64 = arith.constant 0 : index
    %c0_65 = arith.constant 0 : index
    %282 = vector.load %arg10[%c0_64, %c0_65] : memref<1x2xf32, #tpu.memory_space<vmem>>, vector<1x2xf32>
    %283 = vector.extract_strided_slice %275 {offsets = [0, 0], sizes = [16, 32], strides = [1, 1]} : vector<32x32xf32> to vector<16x32xf32>
    %284 = vector.extract_strided_slice %273 {offsets = [0, 0], sizes = [16, 64], strides = [1, 1]} : vector<32x64xf32> to vector<16x64xf32>
    %285 = vector.extract_strided_slice %280 {offsets = [0, 0], sizes = [1, 32], strides = [1, 1]} : vector<2x32xf32> to vector<1x32xf32>
    %286 = vector.broadcast %285 : vector<1x32xf32> to vector<16x32xf32>
    %287 = arith.addf %283, %286 : vector<16x32xf32>
    %cst_66 = arith.constant 0.000000e+00 : f32
    %288 = vector.broadcast %cst_66 : f32 to vector<16x32xf32>
    %289 = arith.maximumf %287, %288 : vector<16x32xf32>
    %cst_67 = arith.constant dense<0.000000e+00> : vector<16x2xf32>
    %290 = tpu.matmul %289, %281, %cst_67 {dimension_numbers = #tpu.dot_dimension_numbers<[1], [0], [0], [1], [0, 0, 1, 1], [], []>} : vector<16x32xf32>, vector<32x2xf32>, vector<16x2xf32> -> vector<16x2xf32>
    %291 = vector.broadcast %282 : vector<1x2xf32> to vector<16x2xf32>
    %292 = arith.addf %290, %291 : vector<16x2xf32>
    %cst_68 = arith.constant dense<0xFF800000> : vector<2xf32>
    %293 = vector.multi_reduction <maximumf>, %292, %cst_68 [0] : vector<16x2xf32> to vector<2xf32>
    %294 = vector.shape_cast %293 : vector<2xf32> to vector<1x2xf32>
    %295 = vector.broadcast %294 : vector<1x2xf32> to vector<16x2xf32>
    %296 = arith.subf %292, %295 : vector<16x2xf32>
    %297 = math.exp %296 : vector<16x2xf32>
    %cst_69 = arith.constant dense<0.000000e+00> : vector<2xf32>
    %298 = vector.multi_reduction <add>, %297, %cst_69 [0] : vector<16x2xf32> to vector<2xf32>
    %299 = vector.shape_cast %298 : vector<2xf32> to vector<1x2xf32>
    %300 = vector.broadcast %299 : vector<1x2xf32> to vector<16x2xf32>
    %301 = arith.divf %297, %300 : vector<16x2xf32>
    %cst_70 = arith.constant dense<0.000000e+00> : vector<2x64xf32>
    %302 = tpu.matmul %301, %284, %cst_70 {dimension_numbers = #tpu.dot_dimension_numbers<[0], [0], [1], [1], [0, 1, 1, 1], [], []>} : vector<16x2xf32>, vector<16x64xf32>, vector<2x64xf32> -> vector<2x64xf32>
    %303 = vector.extract_strided_slice %302 {offsets = [0, 0], sizes = [1, 64], strides = [1, 1]} : vector<2x64xf32> to vector<1x64xf32>
    %304 = vector.extract_strided_slice %302 {offsets = [1, 0], sizes = [1, 64], strides = [1, 1]} : vector<2x64xf32> to vector<1x64xf32>
    %305 = tpu.concatenate %303, %304 in 1 : vector<1x64xf32>, vector<1x64xf32> -> vector<1x128xf32>
    %306 = vector.extract_strided_slice %275 {offsets = [16, 0], sizes = [16, 32], strides = [1, 1]} : vector<32x32xf32> to vector<16x32xf32>
    %307 = vector.extract_strided_slice %273 {offsets = [16, 0], sizes = [16, 64], strides = [1, 1]} : vector<32x64xf32> to vector<16x64xf32>
    %308 = vector.extract_strided_slice %280 {offsets = [1, 0], sizes = [1, 32], strides = [1, 1]} : vector<2x32xf32> to vector<1x32xf32>
    %309 = vector.broadcast %308 : vector<1x32xf32> to vector<16x32xf32>
    %310 = arith.addf %306, %309 : vector<16x32xf32>
    %cst_71 = arith.constant 0.000000e+00 : f32
    %311 = vector.broadcast %cst_71 : f32 to vector<16x32xf32>
    %312 = arith.maximumf %310, %311 : vector<16x32xf32>
    %cst_72 = arith.constant dense<0.000000e+00> : vector<16x2xf32>
    %313 = tpu.matmul %312, %281, %cst_72 {dimension_numbers = #tpu.dot_dimension_numbers<[1], [0], [0], [1], [0, 0, 1, 1], [], []>} : vector<16x32xf32>, vector<32x2xf32>, vector<16x2xf32> -> vector<16x2xf32>
    %314 = vector.broadcast %282 : vector<1x2xf32> to vector<16x2xf32>
    %315 = arith.addf %313, %314 : vector<16x2xf32>
    %cst_73 = arith.constant dense<0xFF800000> : vector<2xf32>
    %316 = vector.multi_reduction <maximumf>, %315, %cst_73 [0] : vector<16x2xf32> to vector<2xf32>
    %317 = vector.shape_cast %316 : vector<2xf32> to vector<1x2xf32>
    %318 = vector.broadcast %317 : vector<1x2xf32> to vector<16x2xf32>
    %319 = arith.subf %315, %318 : vector<16x2xf32>
    %320 = math.exp %319 : vector<16x2xf32>
    %cst_74 = arith.constant dense<0.000000e+00> : vector<2xf32>
    %321 = vector.multi_reduction <add>, %320, %cst_74 [0] : vector<16x2xf32> to vector<2xf32>
    %322 = vector.shape_cast %321 : vector<2xf32> to vector<1x2xf32>
    %323 = vector.broadcast %322 : vector<1x2xf32> to vector<16x2xf32>
    %324 = arith.divf %320, %323 : vector<16x2xf32>
    %cst_75 = arith.constant dense<0.000000e+00> : vector<2x64xf32>
    %325 = tpu.matmul %324, %307, %cst_75 {dimension_numbers = #tpu.dot_dimension_numbers<[0], [0], [1], [1], [0, 1, 1, 1], [], []>} : vector<16x2xf32>, vector<16x64xf32>, vector<2x64xf32> -> vector<2x64xf32>
    %326 = vector.extract_strided_slice %325 {offsets = [0, 0], sizes = [1, 64], strides = [1, 1]} : vector<2x64xf32> to vector<1x64xf32>
    %327 = vector.extract_strided_slice %325 {offsets = [1, 0], sizes = [1, 64], strides = [1, 1]} : vector<2x64xf32> to vector<1x64xf32>
    %328 = tpu.concatenate %326, %327 in 1 : vector<1x64xf32>, vector<1x64xf32> -> vector<1x128xf32>
    %329 = tpu.concatenate %305, %328 in 0 : vector<1x128xf32>, vector<1x128xf32> -> vector<2x128xf32>
    %c0_76 = arith.constant 0 : index
    %c0_77 = arith.constant 0 : index
    %330 = vector.load %arg11[%c0_76, %c0_77] : memref<128x128xf32, #tpu.memory_space<vmem>>, vector<128x128xf32>
    %cst_78 = arith.constant dense<0.000000e+00> : vector<2x128xf32>
    %331 = tpu.matmul %329, %330, %cst_78 {dimension_numbers = #tpu.dot_dimension_numbers<[1], [0], [0], [1], [0, 0, 1, 1], [], []>} : vector<2x128xf32>, vector<128x128xf32>, vector<2x128xf32> -> vector<2x128xf32>
    %c0_79 = arith.constant 0 : index
    %c0_80 = arith.constant 0 : index
    %332 = vector.load %arg12[%c0_79, %c0_80] : memref<64x128xf32, #tpu.memory_space<vmem>>, vector<64x128xf32>
    %cst_81 = arith.constant dense<0.000000e+00> : vector<2x128xf32>
    %333 = tpu.matmul %264, %332, %cst_81 {dimension_numbers = #tpu.dot_dimension_numbers<[1], [0], [0], [1], [0, 0, 1, 1], [], []>} : vector<2x64xf32>, vector<64x128xf32>, vector<2x128xf32> -> vector<2x128xf32>
    %334 = arith.addf %331, %333 : vector<2x128xf32>
    %c0_82 = arith.constant 0 : index
    %c0_83 = arith.constant 0 : index
    %335 = vector.load %arg13[%c0_82, %c0_83] : memref<1x128xf32, #tpu.memory_space<vmem>>, vector<1x128xf32>
    %336 = vector.broadcast %335 : vector<1x128xf32> to vector<2x128xf32>
    %337 = arith.addf %334, %336 : vector<2x128xf32>
    %cst_84 = arith.constant 0.000000e+00 : f32
    %338 = vector.broadcast %cst_84 : f32 to vector<2x128xf32>
    %339 = arith.maximumf %337, %338 : vector<2x128xf32>
    %c0_85 = arith.constant 0 : index
    %c0_86 = arith.constant 0 : index
    %340 = vector.load %arg14[%c0_85, %c0_86] : memref<128x64xf32, #tpu.memory_space<vmem>>, vector<128x64xf32>
    %cst_87 = arith.constant dense<0.000000e+00> : vector<2x64xf32>
    %341 = tpu.matmul %339, %340, %cst_87 {dimension_numbers = #tpu.dot_dimension_numbers<[1], [0], [0], [1], [0, 0, 1, 1], [], []>} : vector<2x128xf32>, vector<128x64xf32>, vector<2x64xf32> -> vector<2x64xf32>
    %c0_88 = arith.constant 0 : index
    %c0_89 = arith.constant 0 : index
    %342 = vector.load %arg15[%c0_88, %c0_89] : memref<1x64xf32, #tpu.memory_space<vmem>>, vector<1x64xf32>
    %343 = vector.broadcast %342 : vector<1x64xf32> to vector<2x64xf32>
    %344 = arith.addf %341, %343 : vector<2x64xf32>
    %c0_90 = arith.constant 0 : index
    %c0_91 = arith.constant 0 : index
    %345 = vector.load %arg16[%c0_90, %c0_91] : memref<2x64xf32, #tpu.memory_space<vmem>>, vector<2x64xf32>
    tpu.vector_store %arg16[%c0_90, %c0_91], %344 {strides = array<i32>} : memref<2x64xf32, #tpu.memory_space<vmem>>, vector<2x64xf32>,
    return
  }
}

</mosaic_0001>

<llo_original>
// kernel: stacked_attention_embedding.1
$region0: #{stacked_attention_embedding.1}
  #allocation0 [shape = 'u32[]', space=smem, size = 0x4, offset = 0x4, fixed_abs, tag = 'smem constant byte address 0x4 - core index']
  #allocation1 [shape = 'u32[144,128]{1,0:T(1,128)}', space=vmem, size = 0x12000, scoped, tag = 'internal scratch']
  %s0 = inlined_call_operand.vmem [shape: f32[16,64], index: 0, kind: input, shape index: {}]
  %s1 = inlined_call_operand.vmem [shape: f32[16,64], index: 1, kind: input, shape index: {}]
  %s2 = inlined_call_operand.vmem [shape: f32[32,64], index: 2, kind: input, shape index: {}]
  %s3 = inlined_call_operand.vmem [shape: f32[64,256], index: 3, kind: input, shape index: {}]
  %s4 = inlined_call_operand.vmem [shape: f32[64,256], index: 4, kind: input, shape index: {}]
  %s5 = inlined_call_operand.vmem [shape: f32[1,256], index: 5, kind: input, shape index: {}]
  %s6 = inlined_call_operand.vmem [shape: f32[64,32], index: 6, kind: input, shape index: {}]
  %s7 = inlined_call_operand.vmem [shape: f32[64,32], index: 7, kind: input, shape index: {}]
  %s8 = inlined_call_operand.vmem [shape: f32[1,32], index: 8, kind: input, shape index: {}]
  %s9 = inlined_call_operand.vmem [shape: f32[32,2], index: 9, kind: input, shape index: {}]
  %s10 = inlined_call_operand.vmem [shape: f32[1,2], index: 10, kind: input, shape index: {}]
  %s11 = inlined_call_operand.vmem [shape: f32[128,128], index: 11, kind: input, shape index: {}]
  %s12 = inlined_call_operand.vmem [shape: f32[64,128], index: 12, kind: input, shape index: {}]
  %s13 = inlined_call_operand.vmem [shape: f32[1,128], index: 13, kind: input, shape index: {}]
  %s14 = inlined_call_operand.vmem [shape: f32[128,64], index: 14, kind: input, shape index: {}]
  %s15 = inlined_call_operand.vmem [shape: f32[1,64], index: 15, kind: input, shape index: {}]
  %s16 = inlined_call_operand.hbm [shape: f32[2,64], index: 16, kind: output, shape index: {}]
  %s17 = sld [smem:[#allocation0]]
  $region74: #{stacked_attention_embedding.1} parent=0
    _
  %s19 = ssub.s32 1, %s17
  %s20 = scalar_select 0, %s19, %s17
  $region1: #{stacked_attention_embedding.1} parent=0
    #allocation2 [shape = 'u8[1024]{0}', space=vmem, size = 0x400, scoped, tag = 'output window, operand 0, single buffered']
    #allocation3 [shape = 's32[1]{0}', space=sflag, size = 0x4, scoped, tag = 'scoped memory for stacked_attention_embedding.1']
    %21 = vsyncpa [#allocation3], 0
    // Predicated region
    $region2: #{stacked_attention_embedding.1} parent=1 // pred_check
      _
    $region3: #{stacked_attention_embedding.1} parent=1 // pred_check_branch
      %23 = sbr.rel (0) target = $region5
    $region4: #{stacked_attention_embedding.1} parent=1 // pred_region
      _
    $region5: #{stacked_attention_embedding.1} parent=1 // pred_fallthru
      _
    // Predicated region
    $region6: #{stacked_attention_embedding.1} parent=1 // pred_check
      _
    $region7: #{stacked_attention_embedding.1} parent=1 // pred_check_branch
      %25 = sbr.rel (0) target = $region9
    $region8: #{stacked_attention_embedding.1} parent=1 // pred_region
      _
    $region9: #{stacked_attention_embedding.1} parent=1 // pred_fallthru
      _
    // Predicated region
    $region10: #{stacked_attention_embedding.1} parent=1 // pred_check
      _
    $region11: #{stacked_attention_embedding.1} parent=1 // pred_check_branch
      %27 = sbr.rel (0) target = $region13
    $region12: #{stacked_attention_embedding.1} parent=1 // pred_region
      _
    $region13: #{stacked_attention_embedding.1} parent=1 // pred_fallthru
      _
    // Predicated region
    $region14: #{stacked_attention_embedding.1} parent=1 // pred_check
      _
    $region15: #{stacked_attention_embedding.1} parent=1 // pred_check_branch
      %29 = sbr.rel (0) target = $region17
    $region16: #{stacked_attention_embedding.1} parent=1 // pred_region
      _
    $region17: #{stacked_attention_embedding.1} parent=1 // pred_fallthru
      _
    // Predicated region
    $region18: #{stacked_attention_embedding.1} parent=1 // pred_check
      _
    $region19: #{stacked_attention_embedding.1} parent=1 // pred_check_branch
      %31 = sbr.rel (0) target = $region21
    $region20: #{stacked_attention_embedding.1} parent=1 // pred_region
      _
    $region21: #{stacked_attention_embedding.1} parent=1 // pred_fallthru
      _
    // Predicated region
    $region22: #{stacked_attention_embedding.1} parent=1 // pred_check
      _
    $region23: #{stacked_attention_embedding.1} parent=1 // pred_check_branch
      %33 = sbr.rel (0) target = $region25
    $region24: #{stacked_attention_embedding.1} parent=1 // pred_region
      _
    $region25: #{stacked_attention_embedding.1} parent=1 // pred_fallthru
      _
    // Predicated region
    $region26: #{stacked_attention_embedding.1} parent=1 // pred_check
      _
    $region27: #{stacked_attention_embedding.1} parent=1 // pred_check_branch
      %35 = sbr.rel (0) target = $region29
    $region28: #{stacked_attention_embedding.1} parent=1 // pred_region
      _
    $region29: #{stacked_attention_embedding.1} parent=1 // pred_fallthru
      _
    // Predicated region
    $region30: #{stacked_attention_embedding.1} parent=1 // pred_check
      _
    $region31: #{stacked_attention_embedding.1} parent=1 // pred_check_branch
      %37 = sbr.rel (0) target = $region33
    $region32: #{stacked_attention_embedding.1} parent=1 // pred_region
      _
    $region33: #{stacked_attention_embedding.1} parent=1 // pred_fallthru
      _
    // Predicated region
    $region34: #{stacked_attention_embedding.1} parent=1 // pred_check
      _
    $region35: #{stacked_attention_embedding.1} parent=1 // pred_check_branch
      %39 = sbr.rel (0) target = $region37
    $region36: #{stacked_attention_embedding.1} parent=1 // pred_region
      _
    $region37: #{stacked_attention_embedding.1} parent=1 // pred_fallthru
      _
    // Predicated region
    $region38: #{stacked_attention_embedding.1} parent=1 // pred_check
      _
    $region39: #{stacked_attention_embedding.1} parent=1 // pred_check_branch
      %41 = sbr.rel (0) target = $region41
    $region40: #{stacked_attention_embedding.1} parent=1 // pred_region
      _
    $region41: #{stacked_attention_embedding.1} parent=1 // pred_fallthru
      _
    // Predicated region
    $region42: #{stacked_attention_embedding.1} parent=1 // pred_check
      _
    $region43: #{stacked_attention_embedding.1} parent=1 // pred_check_branch
      %43 = sbr.rel (0) target = $region45
    $region44: #{stacked_attention_embedding.1} parent=1 // pred_region
      _
    $region45: #{stacked_attention_embedding.1} parent=1 // pred_fallthru
      _
    // Predicated region
    $region46: #{stacked_attention_embedding.1} parent=1 // pred_check
      _
    $region47: #{stacked_attention_embedding.1} parent=1 // pred_check_branch
      %45 = sbr.rel (0) target = $region49
    $region48: #{stacked_attention_embedding.1} parent=1 // pred_region
      _
    $region49: #{stacked_attention_embedding.1} parent=1 // pred_fallthru
      _
    // Predicated region
    $region50: #{stacked_attention_embedding.1} parent=1 // pred_check
      _
    $region51: #{stacked_attention_embedding.1} parent=1 // pred_check_branch
      %47 = sbr.rel (0) target = $region53
    $region52: #{stacked_attention_embedding.1} parent=1 // pred_region
      _
    $region53: #{stacked_attention_embedding.1} parent=1 // pred_fallthru
      _
    // Predicated region
    $region54: #{stacked_attention_embedding.1} parent=1 // pred_check
      _
    $region55: #{stacked_attention_embedding.1} parent=1 // pred_check_branch
      %49 = sbr.rel (0) target = $region57
    $region56: #{stacked_attention_embedding.1} parent=1 // pred_region
      _
    $region57: #{stacked_attention_embedding.1} parent=1 // pred_fallthru
      _
    // Predicated region
    $region58: #{stacked_attention_embedding.1} parent=1 // pred_check
      _
    $region59: #{stacked_attention_embedding.1} parent=1 // pred_check_branch
      %51 = sbr.rel (0) target = $region61
    $region60: #{stacked_attention_embedding.1} parent=1 // pred_region
      _
    $region61: #{stacked_attention_embedding.1} parent=1 // pred_fallthru
      _
    // Predicated region
    $region62: #{stacked_attention_embedding.1} parent=1 // pred_check
      _
    $region63: #{stacked_attention_embedding.1} parent=1 // pred_check_branch
      %53 = sbr.rel (0) target = $region65
    $region64: #{stacked_attention_embedding.1} parent=1 // pred_region
      _
    $region65: #{stacked_attention_embedding.1} parent=1 // pred_fallthru
      _
    %v54 = vld [vmem:[%s0] sm:$0xff]
    %v55 = vld [vmem:[%s0 + $0x8] sm:$0xff]
    %v56 = vld [vmem:[%s3] sm:$0xff]
    %v57 = vld [vmem:[%s3 + $0x8] sm:$0xff]
    %v58 = vld [vmem:[%s3 + $0x10] sm:$0xff]
    %v59 = vld [vmem:[%s3 + $0x18] sm:$0xff]
    %v60 = vld [vmem:[%s3 + $0x20] sm:$0xff]
    %v61 = vld [vmem:[%s3 + $0x28] sm:$0xff]
    %v62 = vld [vmem:[%s3 + $0x30] sm:$0xff]
    %v63 = vld [vmem:[%s3 + $0x38] sm:$0xff]
    %v64 = vld [vmem:[%s3 + $0x40] sm:$0xff]
    %v65 = vld [vmem:[%s3 + $0x48] sm:$0xff]
    %v66 = vld [vmem:[%s3 + $0x50] sm:$0xff]
    %v67 = vld [vmem:[%s3 + $0x58] sm:$0xff]
    %v68 = vld [vmem:[%s3 + $0x60] sm:$0xff]
    %v69 = vld [vmem:[%s3 + $0x68] sm:$0xff]
    %v70 = vld [vmem:[%s3 + $0x70] sm:$0xff]
    %v71 = vld [vmem:[%s3 + $0x78] sm:$0xff]
    %v72 = vld [vmem:[%s5] sm:$0x3]
    %v74 = vlaneseq
    %v75 = vshrl.u32 %v74, 7
    %v76 = vsub.s32 0, %v75
    %v77 = vrot.slane %v72, %v76
    %v78 = vlaneseq
    %v79 = vshrl.u32 %v78, 7
    %v80 = vsub.s32 1, %v79
    %v81 = vrot.slane %v72, %v80
    %vm84 = vcmask 523264
    %v86 = vsel %vm84, %v54, 0
    %v89 = vsel %vm84, %v55, 0
    %91 = vmatprep.subr.mxu0 %v57
    %92 = vmatpush1.msra.mxu0 %v56
    %93 = vmatprep.subr.mxu0 %v59
    %94 = vmatpush1.msra.mxu0 %v58
    %95 = vmatprep.subr.mxu0 %v61
    %96 = vmatpush1.msra.mxu0 %v60
    %97 = vmatprep.subr.mxu0 %v63
    %98 = vmatpush1.msra.mxu0 %v62
    %99 = vmatprep.subr.mxu0 %v65
    %100 = vmatpush1.msra.mxu0 %v64
    %101 = vmatprep.subr.mxu0 %v67
    %102 = vmatpush1.msra.mxu0 %v66
    %103 = vmatprep.subr.mxu0 %v69
    %104 = vmatpush1.msra.mxu0 %v68
    %105 = vmatprep.subr.mxu0 %v71
    %106 = vmatpush1.msra.mxu0 %v70
    %107 = vmatprep.subr.mxu0 0.0
    %108 = vmatpush1.msra.mxu0 0.0
    %109 = vmatprep.subr.mxu0 0.0
    %110 = vmatpush1.msra.mxu0 0.0
    %111 = vmatprep.subr.mxu0 0.0
    %112 = vmatpush1.msra.mxu0 0.0
    %113 = vmatprep.subr.mxu0 0.0
    %114 = vmatpush1.msra.mxu0 0.0
    %115 = vmatprep.subr.mxu0 0.0
    %116 = vmatpush1.msra.mxu0 0.0
    %117 = vmatprep.subr.mxu0 0.0
    %118 = vmatpush1.msra.mxu0 0.0
    %119 = vmatprep.subr.mxu0 0.0
    %120 = vmatpush1.msra.mxu0 0.0
    %121 = vmatprep.subr.mxu0 0.0
    %122 = vmatpush1.msra.mxu0 0.0
    %123 = vmatprep.subr.mxu0 0.0
    %124 = vmatpush1.msra.mxu0 0.0
    %125 = vmatprep.subr.mxu0 0.0
    %126 = vmatpush1.msra.mxu0 0.0
    %127 = vmatprep.subr.mxu0 0.0
    %128 = vmatpush1.msra.mxu0 0.0
    %129 = vmatprep.subr.mxu0 0.0
    %130 = vmatpush1.msra.mxu0 0.0
    %131 = vmatprep.subr.mxu0 0.0
    %132 = vmatpush1.msra.mxu0 0.0
    %133 = vmatprep.subr.mxu0 0.0
    %134 = vmatpush1.msra.mxu0 0.0
    %135 = vmatprep.subr.mxu0 0.0
    %136 = vmatpush1.msra.mxu0 0.0
    %137 = vmatprep.subr.mxu0 0.0
    %138 = vmatpush1.msra.mxu0 0.0
    %139 = vmatprep.subr.mxu0 0.0
    %140 = vmatpush1.msra.mxu0 0.0
    %141 = vmatprep.subr.mxu0 0.0
    %142 = vmatpush1.msra.mxu0 0.0
    %143 = vmatprep.subr.mxu0 0.0
    %144 = vmatpush1.msra.mxu0 0.0
    %145 = vmatprep.subr.mxu0 0.0
    %146 = vmatpush1.msra.mxu0 0.0
    %147 = vmatprep.subr.mxu0 0.0
    %148 = vmatpush1.msra.mxu0 0.0
    %149 = vmatprep.subr.mxu0 0.0
    %150 = vmatpush1.msra.mxu0 0.0
    %151 = vmatprep.subr.mxu0 0.0
    %152 = vmatpush1.msra.mxu0 0.0
    %153 = vmatprep.subr.mxu0 0.0
    %154 = vmatpush1.msra.mxu0 0.0
    %155 = vmatprep.mubr.f32.mxu0 0.0
    %156 = vmatmul.mubr.f32.gmra.mrb[0].mxu0 %v86
    %v157 = vpop.f32.mrb[0].mxu0
    %v158 = vadd.f32 %v77, %v157
    %v159 = vpop.f32.mrb[0].mxu0
    %v160 = vadd.f32 %v81, %v159
    %161 = vmatprep.mubr.f32.mxu0 0.0
    %162 = vmatmul.mubr.f32.gmra.mrb[0].mxu0 %v89
    %v163 = vpop.f32.mrb[0].mxu0
    %v164 = vadd.f32 %v77, %v163
    %v165 = vpop.f32.mrb[0].mxu0
    %v166 = vadd.f32 %v81, %v165
    %167 = vdwg.mxu0
    %v168 = vld [vmem:[%s1] sm:$0xff]
    %v169 = vld [vmem:[%s1 + $0x8] sm:$0xff]
    %v170 = vld [vmem:[%s4] sm:$0xff]
    %v171 = vld [vmem:[%s4 + $0x8] sm:$0xff]
    %v172 = vld [vmem:[%s4 + $0x10] sm:$0xff]
    %v173 = vld [vmem:[%s4 + $0x18] sm:$0xff]
    %v174 = vld [vmem:[%s4 + $0x20] sm:$0xff]
    %v175 = vld [vmem:[%s4 + $0x28] sm:$0xff]
    %v176 = vld [vmem:[%s4 + $0x30] sm:$0xff]
    %v177 = vld [vmem:[%s4 + $0x38] sm:$0xff]
    %v178 = vld [vmem:[%s4 + $0x40] sm:$0xff]
    %v179 = vld [vmem:[%s4 + $0x48] sm:$0xff]
    %v180 = vld [vmem:[%s4 + $0x50] sm:$0xff]
    %v181 = vld [vmem:[%s4 + $0x58] sm:$0xff]
    %v182 = vld [vmem:[%s4 + $0x60] sm:$0xff]
    %v183 = vld [vmem:[%s4 + $0x68] sm:$0xff]
    %v184 = vld [vmem:[%s4 + $0x70] sm:$0xff]
    %v185 = vld [vmem:[%s4 + $0x78] sm:$0xff]
    %v187 = vsel %vm84, 0.0, 0
    %189 = vmatprep.subr.mxu0 %v171
    %190 = vmatpush1.msra.mxu0 %v170
    %191 = vmatprep.subr.mxu0 %v173
    %192 = vmatpush1.msra.mxu0 %v172
    %193 = vmatprep.subr.mxu0 %v175
    %194 = vmatpush1.msra.mxu0 %v174
    %195 = vmatprep.subr.mxu0 %v177
    %196 = vmatpush1.msra.mxu0 %v176
    %197 = vmatprep.subr.mxu0 %v179
    %198 = vmatpush1.msra.mxu0 %v178
    %199 = vmatprep.subr.mxu0 %v181
    %200 = vmatpush1.msra.mxu0 %v180
    %201 = vmatprep.subr.mxu0 %v183
    %202 = vmatpush1.msra.mxu0 %v182
    %203 = vmatprep.subr.mxu0 %v185
    %204 = vmatpush1.msra.mxu0 %v184
    %205 = vmatprep.subr.mxu0 0.0
    %206 = vmatpush1.msra.mxu0 0.0
    %207 = vmatprep.subr.mxu0 0.0
    %208 = vmatpush1.msra.mxu0 0.0
    %209 = vmatprep.subr.mxu0 0.0
    %210 = vmatpush1.msra.mxu0 0.0
    %211 = vmatprep.subr.mxu0 0.0
    %212 = vmatpush1.msra.mxu0 0.0
    %213 = vmatprep.subr.mxu0 0.0
    %214 = vmatpush1.msra.mxu0 0.0
    %215 = vmatprep.subr.mxu0 0.0
    %216 = vmatpush1.msra.mxu0 0.0
    %217 = vmatprep.subr.mxu0 0.0
    %218 = vmatpush1.msra.mxu0 0.0
    %219 = vmatprep.subr.mxu0 0.0
    %220 = vmatpush1.msra.mxu0 0.0
    %221 = vmatprep.subr.mxu0 0.0
    %222 = vmatpush1.msra.mxu0 0.0
    %223 = vmatprep.subr.mxu0 0.0
    %224 = vmatpush1.msra.mxu0 0.0
    %225 = vmatprep.subr.mxu0 0.0
    %226 = vmatpush1.msra.mxu0 0.0
    %227 = vmatprep.subr.mxu0 0.0
    %228 = vmatpush1.msra.mxu0 0.0
    %229 = vmatprep.subr.mxu0 0.0
    %230 = vmatpush1.msra.mxu0 0.0
    %231 = vmatprep.subr.mxu0 0.0
    %232 = vmatpush1.msra.mxu0 0.0
    %233 = vmatprep.subr.mxu0 0.0
    %234 = vmatpush1.msra.mxu0 0.0
    %235 = vmatprep.subr.mxu0 0.0
    %236 = vmatpush1.msra.mxu0 0.0
    %237 = vmatprep.subr.mxu0 0.0
    %238 = vmatpush1.msra.mxu0 0.0
    %239 = vmatprep.subr.mxu0 0.0
    %240 = vmatpush1.msra.mxu0 0.0
    %241 = vmatprep.subr.mxu0 0.0
    %242 = vmatpush1.msra.mxu0 0.0
    %243 = vmatprep.subr.mxu0 0.0
    %244 = vmatpush1.msra.mxu0 0.0
    %245 = vmatprep.subr.mxu0 0.0
    %246 = vmatpush1.msra.mxu0 0.0
    %247 = vmatprep.subr.mxu0 0.0
    %248 = vmatpush1.msra.mxu0 0.0
    %249 = vmatprep.subr.mxu0 0.0
    %250 = vmatpush1.msra.mxu0 0.0
    %251 = vmatprep.subr.mxu0 0.0
    %252 = vmatpush1.msra.mxu0 0.0
    %253 = vmatprep.mubr.f32.mxu0 0.0
    %254 = vmatmul.mubr.f32.gmra.mrb[0].mxu0 %v187
    %v255 = vpop.f32.mrb[0].mxu0
    %v256 = vadd.f32 0.0, %v255
    %v257 = vpop.f32.mrb[0].mxu0
    %v258 = vadd.f32 0.0, %v257
    %259 = vdwg.mxu0
    %v260 = vadd.f32 %v158, %v256
    %v261 = vadd.f32 %v160, %v258
    %v262 = vxor.u32 %v260, 2147483648
    %v263 = vmul.f32 %v262, 1.442695
    %v264 = vpow.pop %v263
    %v265 = vadd.f32 %v264, 1.0
    %v266 = vrcp.pop %v265
    %v267 = vmul.f32 1.0, %v266
    %v268 = vtanh.pop %v261
    %v269 = vxor.u32 %v261, 2147483648
    %v270 = vmul.f32 %v269, 1.442695
    %v271 = vpow.pop %v270
    %v272 = vadd.f32 %v271, 1.0
    %v273 = vrcp.pop %v272
    %v274 = vmul.f32 1.0, %v273
    %v275 = vmul.f32 %v267, 0.0
    %v276 = vmul.f32 %v267, %v268
    %278 = vrot.lane.b32.xlu0 %v276, 64
    %v279 = vpop.permute.xlu0 %278
    %v281 = vadd.f32 %v275, %v279
    %v282 = vtanh.pop %v281
    %v283 = vmul.f32 %v274, %v282
    %vm284 = vcmp.gt.f32.partialorder %v168, 0.5
    %286 = vrot.lane.b32.xlu0 %v283, 64
    %v287 = vpop.permute.xlu0 %286
    %v289 = vsel %vm284, %v287, 0.0
    %291 = vrot.lane.b32.xlu0 %v281, 64
    %v292 = vpop.permute.xlu0 %291
    %v294 = vsel %vm284, %v292, 0.0
    %v296 = vsel %vm84, %v289, 0
    %298 = vmatprep.subr.mxu0 %v171
    %299 = vmatpush1.msra.mxu0 %v170
    %300 = vmatprep.subr.mxu0 %v173
    %301 = vmatpush1.msra.mxu0 %v172
    %302 = vmatprep.subr.mxu0 %v175
    %303 = vmatpush1.msra.mxu0 %v174
    %304 = vmatprep.subr.mxu0 %v177
    %305 = vmatpush1.msra.mxu0 %v176
    %306 = vmatprep.subr.mxu0 %v179
    %307 = vmatpush1.msra.mxu0 %v178
    %308 = vmatprep.subr.mxu0 %v181
    %309 = vmatpush1.msra.mxu0 %v180
    %310 = vmatprep.subr.mxu0 %v183
    %311 = vmatpush1.msra.mxu0 %v182
    %312 = vmatprep.subr.mxu0 %v185
    %313 = vmatpush1.msra.mxu0 %v184
    %314 = vmatprep.subr.mxu0 0.0
    %315 = vmatpush1.msra.mxu0 0.0
    %316 = vmatprep.subr.mxu0 0.0
    %317 = vmatpush1.msra.mxu0 0.0
    %318 = vmatprep.subr.mxu0 0.0
    %319 = vmatpush1.msra.mxu0 0.0
    %320 = vmatprep.subr.mxu0 0.0
    %321 = vmatpush1.msra.mxu0 0.0
    %322 = vmatprep.subr.mxu0 0.0
    %323 = vmatpush1.msra.mxu0 0.0
    %324 = vmatprep.subr.mxu0 0.0
    %325 = vmatpush1.msra.mxu0 0.0
    %326 = vmatprep.subr.mxu0 0.0
    %327 = vmatpush1.msra.mxu0 0.0
    %328 = vmatprep.subr.mxu0 0.0
    %329 = vmatpush1.msra.mxu0 0.0
    %330 = vmatprep.subr.mxu0 0.0
    %331 = vmatpush1.msra.mxu0 0.0
    %332 = vmatprep.subr.mxu0 0.0
    %333 = vmatpush1.msra.mxu0 0.0
    %334 = vmatprep.subr.mxu0 0.0
    %335 = vmatpush1.msra.mxu0 0.0
    %336 = vmatprep.subr.mxu0 0.0
    %337 = vmatpush1.msra.mxu0 0.0
    %338 = vmatprep.subr.mxu0 0.0
    %339 = vmatpush1.msra.mxu0 0.0
    %340 = vmatprep.subr.mxu0 0.0
    %341 = vmatpush1.msra.mxu0 0.0
    %342 = vmatprep.subr.mxu0 0.0
    %343 = vmatpush1.msra.mxu0 0.0
    %344 = vmatprep.subr.mxu0 0.0
    %345 = vmatpush1.msra.mxu0 0.0
    %346 = vmatprep.subr.mxu0 0.0
    %347 = vmatpush1.msra.mxu0 0.0
    %348 = vmatprep.subr.mxu0 0.0
    %349 = vmatpush1.msra.mxu0 0.0
    %350 = vmatprep.subr.mxu0 0.0
    %351 = vmatpush1.msra.mxu0 0.0
    %352 = vmatprep.subr.mxu0 0.0
    %353 = vmatpush1.msra.mxu0 0.0
    %354 = vmatprep.subr.mxu0 0.0
    %355 = vmatpush1.msra.mxu0 0.0
    %356 = vmatprep.subr.mxu0 0.0
    %357 = vmatpush1.msra.mxu0 0.0
    %358 = vmatprep.subr.mxu0 0.0
    %359 = vmatpush1.msra.mxu0 0.0
    %360 = vmatprep.subr.mxu0 0.0
    %361 = vmatpush1.msra.mxu0 0.0
    %362 = vmatprep.mubr.f32.mxu0 0.0
    %363 = vmatmul.mubr.f32.gmra.mrb[0].mxu0 %v296
    %v364 = vpop.f32.mrb[0].mxu0
    %v365 = vadd.f32 0.0, %v364
    %v366 = vpop.f32.mrb[0].mxu0
    %v367 = vadd.f32 0.0, %v366
    %368 = vdwg.mxu0
    %v371 = vrot.slane %v365, 6
    %v372 = vrot.slane %v367, 6
    %v375 = vadd.f32 %v158, %v371
    %v376 = vadd.f32 %v160, %v372
    %v377 = vxor.u32 %v375, 2147483648
    %v378 = vmul.f32 %v377, 1.442695
    %v379 = vpow.pop %v378
    %v380 = vadd.f32 %v379, 1.0
    %v381 = vrcp.pop %v380
    %v382 = vmul.f32 1.0, %v381
    %v383 = vtanh.pop %v376
    %v384 = vxor.u32 %v376, 2147483648
    %v385 = vmul.f32 %v384, 1.442695
    %v386 = vpow.pop %v385
    %v387 = vadd.f32 %v386, 1.0
    %v388 = vrcp.pop %v387
    %v389 = vmul.f32 1.0, %v388
    %v391 = vrot.slane %v294, 6
    %392 = vrot.lane.b32.xlu0 %v391, 64
    %v393 = vpop.permute.xlu0 %392
    %v395 = vmul.f32 %v382, %v393
    %v396 = vmul.f32 %v382, %v383
    %398 = vrot.lane.b32.xlu0 %v396, 64
    %v399 = vpop.permute.xlu0 %398
    %v401 = vadd.f32 %v395, %v399
    %v402 = vtanh.pop %v401
    %v403 = vmul.f32 %v389, %v402
    %405 = vrot.lane.b32.xlu0 %v403, 64
    %v406 = vpop.permute.xlu0 %405
    %v408 = vrot.slane %v289, 6
    %v410 = vsel %vm284, %v406, %v408
    %412 = vrot.lane.b32.xlu0 %v401, 64
    %v413 = vpop.permute.xlu0 %412
    %v416 = vsel %vm284, %v413, %v391
    %v418 = vrot.slane %v410, 2
    %v419 = vsel %vm84, %v418, 0
    %421 = vmatprep.subr.mxu0 %v171
    %422 = vmatpush1.msra.mxu0 %v170
    %423 = vmatprep.subr.mxu0 %v173
    %424 = vmatpush1.msra.mxu0 %v172
    %425 = vmatprep.subr.mxu0 %v175
    %426 = vmatpush1.msra.mxu0 %v174
    %427 = vmatprep.subr.mxu0 %v177
    %428 = vmatpush1.msra.mxu0 %v176
    %429 = vmatprep.subr.mxu0 %v179
    %430 = vmatpush1.msra.mxu0 %v178
    %431 = vmatprep.subr.mxu0 %v181
    %432 = vmatpush1.msra.mxu0 %v180
    %433 = vmatprep.subr.mxu0 %v183
    %434 = vmatpush1.msra.mxu0 %v182
    %435 = vmatprep.subr.mxu0 %v185
    %436 = vmatpush1.msra.mxu0 %v184
    %437 = vmatprep.subr.mxu0 0.0
    %438 = vmatpush1.msra.mxu0 0.0
    %439 = vmatprep.subr.mxu0 0.0
    %440 = vmatpush1.msra.mxu0 0.0
    %441 = vmatprep.subr.mxu0 0.0
    %442 = vmatpush1.msra.mxu0 0.0
    %443 = vmatprep.subr.mxu0 0.0
    %444 = vmatpush1.msra.mxu0 0.0
    %445 = vmatprep.subr.mxu0 0.0
    %446 = vmatpush1.msra.mxu0 0.0
    %447 = vmatprep.subr.mxu0 0.0
    %448 = vmatpush1.msra.mxu0 0.0
    %449 = vmatprep.subr.mxu0 0.0
    %450 = vmatpush1.msra.mxu0 0.0
    %451 = vmatprep.subr.mxu0 0.0
    %452 = vmatpush1.msra.mxu0 0.0
    %453 = vmatprep.subr.mxu0 0.0
    %454 = vmatpush1.msra.mxu0 0.0
    %455 = vmatprep.subr.mxu0 0.0
    %456 = vmatpush1.msra.mxu0 0.0
    %457 = vmatprep.subr.mxu0 0.0
    %458 = vmatpush1.msra.mxu0 0.0
    %459 = vmatprep.subr.mxu0 0.0
    %460 = vmatpush1.msra.mxu0 0.0
    %461 = vmatprep.subr.mxu0 0.0
    %462 = vmatpush1.msra.mxu0 0.0
    %463 = vmatprep.subr.mxu0 0.0
    %464 = vmatpush1.msra.mxu0 0.0
    %465 = vmatprep.subr.mxu0 0.0
    %466 = vmatpush1.msra.mxu0 0.0
    %467 = vmatprep.subr.mxu0 0.0
    %468 = vmatpush1.msra.mxu0 0.0
    %469 = vmatprep.subr.mxu0 0.0
    %470 = vmatpush1.msra.mxu0 0.0
    %471 = vmatprep.subr.mxu0 0.0
    %472 = vmatpush1.msra.mxu0 0.0
    %473 = vmatprep.subr.mxu0 0.0
    %474 = vmatpush1.msra.mxu0 0.0
    %475 = vmatprep.subr.mxu0 0.0
    %476 = vmatpush1.msra.mxu0 0.0
    %477 = vmatprep.subr.mxu0 0.0
    %478 = vmatpush1.msra.mxu0 0.0
    %479 = vmatprep.subr.mxu0 0.0
    %480 = vmatpush1.msra.mxu0 0.0
    %481 = vmatprep.subr.mxu0 0.0
    %482 = vmatpush1.msra.mxu0 0.0
    %483 = vmatprep.subr.mxu0 0.0
    %484 = vmatpush1.msra.mxu0 0.0
    %485 = vmatprep.mubr.f32.mxu0 0.0
    %486 = vmatmul.mubr.f32.gmra.mrb[0].mxu0 %v419
    %v487 = vpop.f32.mrb[0].mxu0
    %v488 = vadd.f32 0.0, %v487
    %v489 = vpop.f32.mrb[0].mxu0
    %v490 = vadd.f32 0.0, %v489
    %491 = vdwg.mxu0
    %v494 = vrot.slane %v488, 4
    %v495 = vrot.slane %v490, 4
    %v498 = vadd.f32 %v158, %v494
    %v499 = vadd.f32 %v160, %v495
    %v500 = vxor.u32 %v498, 2147483648
    %v501 = vmul.f32 %v500, 1.442695
    %v502 = vpow.pop %v501
    %v503 = vadd.f32 %v502, 1.0
    %v504 = vrcp.pop %v503
    %v505 = vmul.f32 1.0, %v504
    %v506 = vtanh.pop %v499
    %v507 = vxor.u32 %v499, 2147483648
    %v508 = vmul.f32 %v507, 1.442695
    %v509 = vpow.pop %v508
    %v510 = vadd.f32 %v509, 1.0
    %v511 = vrcp.pop %v510
    %v512 = vmul.f32 1.0, %v511
    %v514 = vrot.slane %v416, 6
    %515 = vrot.lane.b32.xlu0 %v514, 64
    %v516 = vpop.permute.xlu0 %515
    %v518 = vmul.f32 %v505, %v516
    %v519 = vmul.f32 %v505, %v506
    %521 = vrot.lane.b32.xlu0 %v519, 64
    %v522 = vpop.permute.xlu0 %521
    %v524 = vadd.f32 %v518, %v522
    %v525 = vtanh.pop %v524
    %v526 = vmul.f32 %v512, %v525
    %528 = vrot.lane.b32.xlu0 %v526, 64
    %v529 = vpop.permute.xlu0 %528
    %v531 = vrot.slane %v410, 6
    %v533 = vsel %vm284, %v529, %v531
    %535 = vrot.lane.b32.xlu0 %v524, 64
    %v536 = vpop.permute.xlu0 %535
    %v539 = vsel %vm284, %v536, %v514
    %v541 = vrot.slane %v533, 4
    %v542 = vsel %vm84, %v541, 0
    %544 = vmatprep.subr.mxu0 %v171
    %545 = vmatpush1.msra.mxu0 %v170
    %546 = vmatprep.subr.mxu0 %v173
    %547 = vmatpush1.msra.mxu0 %v172
    %548 = vmatprep.subr.mxu0 %v175
    %549 = vmatpush1.msra.mxu0 %v174
    %550 = vmatprep.subr.mxu0 %v177
    %551 = vmatpush1.msra.mxu0 %v176
    %552 = vmatprep.subr.mxu0 %v179
    %553 = vmatpush1.msra.mxu0 %v178
    %554 = vmatprep.subr.mxu0 %v181
    %555 = vmatpush1.msra.mxu0 %v180
    %556 = vmatprep.subr.mxu0 %v183
    %557 = vmatpush1.msra.mxu0 %v182
    %558 = vmatprep.subr.mxu0 %v185
    %559 = vmatpush1.msra.mxu0 %v184
    %560 = vmatprep.subr.mxu0 0.0
    %561 = vmatpush1.msra.mxu0 0.0
    %562 = vmatprep.subr.mxu0 0.0
    %563 = vmatpush1.msra.mxu0 0.0
    %564 = vmatprep.subr.mxu0 0.0
    %565 = vmatpush1.msra.mxu0 0.0
    %566 = vmatprep.subr.mxu0 0.0
    %567 = vmatpush1.msra.mxu0 0.0
    %568 = vmatprep.subr.mxu0 0.0
    %569 = vmatpush1.msra.mxu0 0.0
    %570 = vmatprep.subr.mxu0 0.0
    %571 = vmatpush1.msra.mxu0 0.0
    %572 = vmatprep.subr.mxu0 0.0
    %573 = vmatpush1.msra.mxu0 0.0
    %574 = vmatprep.subr.mxu0 0.0
    %575 = vmatpush1.msra.mxu0 0.0
    %576 = vmatprep.subr.mxu0 0.0
    %577 = vmatpush1.msra.mxu0 0.0
    %578 = vmatprep.subr.mxu0 0.0
    %579 = vmatpush1.msra.mxu0 0.0
    %580 = vmatprep.subr.mxu0 0.0
    %581 = vmatpush1.msra.mxu0 0.0
    %582 = vmatprep.subr.mxu0 0.0
    %583 = vmatpush1.msra.mxu0 0.0
    %584 = vmatprep.subr.mxu0 0.0
    %585 = vmatpush1.msra.mxu0 0.0
    %586 = vmatprep.subr.mxu0 0.0
    %587 = vmatpush1.msra.mxu0 0.0
    %588 = vmatprep.subr.mxu0 0.0
    %589 = vmatpush1.msra.mxu0 0.0
    %590 = vmatprep.subr.mxu0 0.0
    %591 = vmatpush1.msra.mxu0 0.0
    %592 = vmatprep.subr.mxu0 0.0
    %593 = vmatpush1.msra.mxu0 0.0
    %594 = vmatprep.subr.mxu0 0.0
    %595 = vmatpush1.msra.mxu0 0.0
    %596 = vmatprep.subr.mxu0 0.0
    %597 = vmatpush1.msra.mxu0 0.0
    %598 = vmatprep.subr.mxu0 0.0
    %599 = vmatpush1.msra.mxu0 0.0
    %600 = vmatprep.subr.mxu0 0.0
    %601 = vmatpush1.msra.mxu0 0.0
    %602 = vmatprep.subr.mxu0 0.0
    %603 = vmatpush1.msra.mxu0 0.0
    %604 = vmatprep.subr.mxu0 0.0
    %605 = vmatpush1.msra.mxu0 0.0
    %606 = vmatprep.subr.mxu0 0.0
    %607 = vmatpush1.msra.mxu0 0.0
    %608 = vmatprep.mubr.f32.mxu0 0.0
    %609 = vmatmul.mubr.f32.gmra.mrb[0].mxu0 %v542
    %v610 = vpop.f32.mrb[0].mxu0
    %v611 = vadd.f32 0.0, %v610
    %v612 = vpop.f32.mrb[0].mxu0
    %v613 = vadd.f32 0.0, %v612
    %614 = vdwg.mxu0
    %v617 = vrot.slane %v611, 2
    %v618 = vrot.slane %v613, 2
    %v621 = vadd.f32 %v158, %v617
    %v622 = vadd.f32 %v160, %v618
    %v623 = vxor.u32 %v621, 2147483648
    %v624 = vmul.f32 %v623, 1.442695
    %v625 = vpow.pop %v624
    %v626 = vadd.f32 %v625, 1.0
    %v627 = vrcp.pop %v626
    %v628 = vmul.f32 1.0, %v627
    %v629 = vtanh.pop %v622
    %v630 = vxor.u32 %v622, 2147483648
    %v631 = vmul.f32 %v630, 1.442695
    %v632 = vpow.pop %v631
    %v633 = vadd.f32 %v632, 1.0
    %v634 = vrcp.pop %v633
    %v635 = vmul.f32 1.0, %v634
    %v637 = vrot.slane %v539, 6
    %638 = vrot.lane.b32.xlu0 %v637, 64
    %v639 = vpop.permute.xlu0 %638
    %v641 = vmul.f32 %v628, %v639
    %v642 = vmul.f32 %v628, %v629
    %644 = vrot.lane.b32.xlu0 %v642, 64
    %v645 = vpop.permute.xlu0 %644
    %v647 = vadd.f32 %v641, %v645
    %v648 = vtanh.pop %v647
    %v649 = vmul.f32 %v635, %v648
    %651 = vrot.lane.b32.xlu0 %v649, 64
    %v652 = vpop.permute.xlu0 %651
    %v654 = vrot.slane %v533, 6
    %v656 = vsel %vm284, %v652, %v654
    %658 = vrot.lane.b32.xlu0 %v647, 64
    %v659 = vpop.permute.xlu0 %658
    %v662 = vsel %vm284, %v659, %v637
    %v664 = vrot.slane %v656, 6
    %v665 = vsel %vm84, %v664, 0
    %667 = vmatprep.subr.mxu0 %v171
    %668 = vmatpush1.msra.mxu0 %v170
    %669 = vmatprep.subr.mxu0 %v173
    %670 = vmatpush1.msra.mxu0 %v172
    %671 = vmatprep.subr.mxu0 %v175
    %672 = vmatpush1.msra.mxu0 %v174
    %673 = vmatprep.subr.mxu0 %v177
    %674 = vmatpush1.msra.mxu0 %v176
    %675 = vmatprep.subr.mxu0 %v179
    %676 = vmatpush1.msra.mxu0 %v178
    %677 = vmatprep.subr.mxu0 %v181
    %678 = vmatpush1.msra.mxu0 %v180
    %679 = vmatprep.subr.mxu0 %v183
    %680 = vmatpush1.msra.mxu0 %v182
    %681 = vmatprep.subr.mxu0 %v185
    %682 = vmatpush1.msra.mxu0 %v184
    %683 = vmatprep.subr.mxu0 0.0
    %684 = vmatpush1.msra.mxu0 0.0
    %685 = vmatprep.subr.mxu0 0.0
    %686 = vmatpush1.msra.mxu0 0.0
    %687 = vmatprep.subr.mxu0 0.0
    %688 = vmatpush1.msra.mxu0 0.0
    %689 = vmatprep.subr.mxu0 0.0
    %690 = vmatpush1.msra.mxu0 0.0
    %691 = vmatprep.subr.mxu0 0.0
    %692 = vmatpush1.msra.mxu0 0.0
    %693 = vmatprep.subr.mxu0 0.0
    %694 = vmatpush1.msra.mxu0 0.0
    %695 = vmatprep.subr.mxu0 0.0
    %696 = vmatpush1.msra.mxu0 0.0
    %697 = vmatprep.subr.mxu0 0.0
    %698 = vmatpush1.msra.mxu0 0.0
    %699 = vmatprep.subr.mxu0 0.0
    %700 = vmatpush1.msra.mxu0 0.0
    %701 = vmatprep.subr.mxu0 0.0
    %702 = vmatpush1.msra.mxu0 0.0
    %703 = vmatprep.subr.mxu0 0.0
    %704 = vmatpush1.msra.mxu0 0.0
    %705 = vmatprep.subr.mxu0 0.0
    %706 = vmatpush1.msra.mxu0 0.0
    %707 = vmatprep.subr.mxu0 0.0
    %708 = vmatpush1.msra.mxu0 0.0
    %709 = vmatprep.subr.mxu0 0.0
    %710 = vmatpush1.msra.mxu0 0.0
    %711 = vmatprep.subr.mxu0 0.0
    %712 = vmatpush1.msra.mxu0 0.0
    %713 = vmatprep.subr.mxu0 0.0
    %714 = vmatpush1.msra.mxu0 0.0
    %715 = vmatprep.subr.mxu0 0.0
    %716 = vmatpush1.msra.mxu0 0.0
    %717 = vmatprep.subr.mxu0 0.0
    %718 = vmatpush1.msra.mxu0 0.0
    %719 = vmatprep.subr.mxu0 0.0
    %720 = vmatpush1.msra.mxu0 0.0
    %721 = vmatprep.subr.mxu0 0.0
    %722 = vmatpush1.msra.mxu0 0.0
    %723 = vmatprep.subr.mxu0 0.0
    %724 = vmatpush1.msra.mxu0 0.0
    %725 = vmatprep.subr.mxu0 0.0
    %726 = vmatpush1.msra.mxu0 0.0
    %727 = vmatprep.subr.mxu0 0.0
    %728 = vmatpush1.msra.mxu0 0.0
    %729 = vmatprep.subr.mxu0 0.0
    %730 = vmatpush1.msra.mxu0 0.0
    %731 = vmatprep.mubr.f32.mxu0 0.0
    %732 = vmatmul.mubr.f32.gmra.mrb[0].mxu0 %v665
    %v733 = vpop.f32.mrb[0].mxu0
    %v734 = vadd.f32 0.0, %v733
    %v735 = vpop.f32.mrb[0].mxu0
    %v736 = vadd.f32 0.0, %v735
    %737 = vdwg.mxu0
    %v738 = vadd.f32 %v164, %v734
    %v739 = vadd.f32 %v166, %v736
    %v740 = vxor.u32 %v738, 2147483648
    %v741 = vmul.f32 %v740, 1.442695
    %v742 = vpow.pop %v741
    %v743 = vadd.f32 %v742, 1.0
    %v744 = vrcp.pop %v743
    %v745 = vmul.f32 1.0, %v744
    %v746 = vtanh.pop %v739
    %v747 = vxor.u32 %v739, 2147483648
    %v748 = vmul.f32 %v747, 1.442695
    %v749 = vpow.pop %v748
    %v750 = vadd.f32 %v749, 1.0
    %v751 = vrcp.pop %v750
    %v752 = vmul.f32 1.0, %v751
    %v754 = vrot.slane %v662, 6
    %755 = vrot.lane.b32.xlu0 %v754, 64
    %v756 = vpop.permute.xlu0 %755
    %v758 = vmul.f32 %v745, %v756
    %v759 = vmul.f32 %v745, %v746
    %761 = vrot.lane.b32.xlu0 %v759, 64
    %v762 = vpop.permute.xlu0 %761
    %v764 = vadd.f32 %v758, %v762
    %v765 = vtanh.pop %v764
    %v766 = vmul.f32 %v752, %v765
    %vm767 = vcmp.gt.f32.partialorder %v169, 0.5
    %769 = vrot.lane.b32.xlu0 %v766, 64
    %v770 = vpop.permute.xlu0 %769
    %v773 = vsel %vm767, %v770, %v664
    %775 = vrot.lane.b32.xlu0 %v764, 64
    %v776 = vpop.permute.xlu0 %775
    %v779 = vsel %vm767, %v776, %v754
    %v781 = vsel %vm84, %v773, 0
    %783 = vmatprep.subr.mxu0 %v171
    %784 = vmatpush1.msra.mxu0 %v170
    %785 = vmatprep.subr.mxu0 %v173
    %786 = vmatpush1.msra.mxu0 %v172
    %787 = vmatprep.subr.mxu0 %v175
    %788 = vmatpush1.msra.mxu0 %v174
    %789 = vmatprep.subr.mxu0 %v177
    %790 = vmatpush1.msra.mxu0 %v176
    %791 = vmatprep.subr.mxu0 %v179
    %792 = vmatpush1.msra.mxu0 %v178
    %793 = vmatprep.subr.mxu0 %v181
    %794 = vmatpush1.msra.mxu0 %v180
    %795 = vmatprep.subr.mxu0 %v183
    %796 = vmatpush1.msra.mxu0 %v182
    %797 = vmatprep.subr.mxu0 %v185
    %798 = vmatpush1.msra.mxu0 %v184
    %799 = vmatprep.subr.mxu0 0.0
    %800 = vmatpush1.msra.mxu0 0.0
    %801 = vmatprep.subr.mxu0 0.0
    %802 = vmatpush1.msra.mxu0 0.0
    %803 = vmatprep.subr.mxu0 0.0
    %804 = vmatpush1.msra.mxu0 0.0
    %805 = vmatprep.subr.mxu0 0.0
    %806 = vmatpush1.msra.mxu0 0.0
    %807 = vmatprep.subr.mxu0 0.0
    %808 = vmatpush1.msra.mxu0 0.0
    %809 = vmatprep.subr.mxu0 0.0
    %810 = vmatpush1.msra.mxu0 0.0
    %811 = vmatprep.subr.mxu0 0.0
    %812 = vmatpush1.msra.mxu0 0.0
    %813 = vmatprep.subr.mxu0 0.0
    %814 = vmatpush1.msra.mxu0 0.0
    %815 = vmatprep.subr.mxu0 0.0
    %816 = vmatpush1.msra.mxu0 0.0
    %817 = vmatprep.subr.mxu0 0.0
    %818 = vmatpush1.msra.mxu0 0.0
    %819 = vmatprep.subr.mxu0 0.0
    %820 = vmatpush1.msra.mxu0 0.0
    %821 = vmatprep.subr.mxu0 0.0
    %822 = vmatpush1.msra.mxu0 0.0
    %823 = vmatprep.subr.mxu0 0.0
    %824 = vmatpush1.msra.mxu0 0.0
    %825 = vmatprep.subr.mxu0 0.0
    %826 = vmatpush1.msra.mxu0 0.0
    %827 = vmatprep.subr.mxu0 0.0
    %828 = vmatpush1.msra.mxu0 0.0
    %829 = vmatprep.subr.mxu0 0.0
    %830 = vmatpush1.msra.mxu0 0.0
    %831 = vmatprep.subr.mxu0 0.0
    %832 = vmatpush1.msra.mxu0 0.0
    %833 = vmatprep.subr.mxu0 0.0
    %834 = vmatpush1.msra.mxu0 0.0
    %835 = vmatprep.subr.mxu0 0.0
    %836 = vmatpush1.msra.mxu0 0.0
    %837 = vmatprep.subr.mxu0 0.0
    %838 = vmatpush1.msra.mxu0 0.0
    %839 = vmatprep.subr.mxu0 0.0
    %840 = vmatpush1.msra.mxu0 0.0
    %841 = vmatprep.subr.mxu0 0.0
    %842 = vmatpush1.msra.mxu0 0.0
    %843 = vmatprep.subr.mxu0 0.0
    %844 = vmatpush1.msra.mxu0 0.0
    %845 = vmatprep.subr.mxu0 0.0
    %846 = vmatpush1.msra.mxu0 0.0
    %847 = vmatprep.mubr.f32.mxu0 0.0
    %848 = vmatmul.mubr.f32.gmra.mrb[0].mxu0 %v781
    %v849 = vpop.f32.mrb[0].mxu0
    %v850 = vadd.f32 0.0, %v849
    %v851 = vpop.f32.mrb[0].mxu0
    %v852 = vadd.f32 0.0, %v851
    %853 = vdwg.mxu0
    %v856 = vrot.slane %v850, 6
    %v857 = vrot.slane %v852, 6
    %v860 = vadd.f32 %v164, %v856
    %v861 = vadd.f32 %v166, %v857
    %v862 = vxor.u32 %v860, 2147483648
    %v863 = vmul.f32 %v862, 1.442695
    %v864 = vpow.pop %v863
    %v865 = vadd.f32 %v864, 1.0
    %v866 = vrcp.pop %v865
    %v867 = vmul.f32 1.0, %v866
    %v868 = vtanh.pop %v861
    %v869 = vxor.u32 %v861, 2147483648
    %v870 = vmul.f32 %v869, 1.442695
    %v871 = vpow.pop %v870
    %v872 = vadd.f32 %v871, 1.0
    %v873 = vrcp.pop %v872
    %v874 = vmul.f32 1.0, %v873
    %v876 = vrot.slane %v779, 6
    %877 = vrot.lane.b32.xlu0 %v876, 64
    %v878 = vpop.permute.xlu0 %877
    %v880 = vmul.f32 %v867, %v878
    %v881 = vmul.f32 %v867, %v868
    %883 = vrot.lane.b32.xlu0 %v881, 64
    %v884 = vpop.permute.xlu0 %883
    %v886 = vadd.f32 %v880, %v884
    %v887 = vtanh.pop %v886
    %v888 = vmul.f32 %v874, %v887
    %890 = vrot.lane.b32.xlu0 %v888, 64
    %v891 = vpop.permute.xlu0 %890
    %v893 = vrot.slane %v773, 6
    %v895 = vsel %vm767, %v891, %v893
    %897 = vrot.lane.b32.xlu0 %v886, 64
    %v898 = vpop.permute.xlu0 %897
    %v901 = vsel %vm767, %v898, %v876
    %v903 = vrot.slane %v895, 2
    %v904 = vsel %vm84, %v903, 0
    %906 = vmatprep.subr.mxu0 %v171
    %907 = vmatpush1.msra.mxu0 %v170
    %908 = vmatprep.subr.mxu0 %v173
    %909 = vmatpush1.msra.mxu0 %v172
    %910 = vmatprep.subr.mxu0 %v175
    %911 = vmatpush1.msra.mxu0 %v174
    %912 = vmatprep.subr.mxu0 %v177
    %913 = vmatpush1.msra.mxu0 %v176
    %914 = vmatprep.subr.mxu0 %v179
    %915 = vmatpush1.msra.mxu0 %v178
    %916 = vmatprep.subr.mxu0 %v181
    %917 = vmatpush1.msra.mxu0 %v180
    %918 = vmatprep.subr.mxu0 %v183
    %919 = vmatpush1.msra.mxu0 %v182
    %920 = vmatprep.subr.mxu0 %v185
    %921 = vmatpush1.msra.mxu0 %v184
    %922 = vmatprep.subr.mxu0 0.0
    %923 = vmatpush1.msra.mxu0 0.0
    %924 = vmatprep.subr.mxu0 0.0
    %925 = vmatpush1.msra.mxu0 0.0
    %926 = vmatprep.subr.mxu0 0.0
    %927 = vmatpush1.msra.mxu0 0.0
    %928 = vmatprep.subr.mxu0 0.0
    %929 = vmatpush1.msra.mxu0 0.0
    %930 = vmatprep.subr.mxu0 0.0
    %931 = vmatpush1.msra.mxu0 0.0
    %932 = vmatprep.subr.mxu0 0.0
    %933 = vmatpush1.msra.mxu0 0.0
    %934 = vmatprep.subr.mxu0 0.0
    %935 = vmatpush1.msra.mxu0 0.0
    %936 = vmatprep.subr.mxu0 0.0
    %937 = vmatpush1.msra.mxu0 0.0
    %938 = vmatprep.subr.mxu0 0.0
    %939 = vmatpush1.msra.mxu0 0.0
    %940 = vmatprep.subr.mxu0 0.0
    %941 = vmatpush1.msra.mxu0 0.0
    %942 = vmatprep.subr.mxu0 0.0
    %943 = vmatpush1.msra.mxu0 0.0
    %944 = vmatprep.subr.mxu0 0.0
    %945 = vmatpush1.msra.mxu0 0.0
    %946 = vmatprep.subr.mxu0 0.0
    %947 = vmatpush1.msra.mxu0 0.0
    %948 = vmatprep.subr.mxu0 0.0
    %949 = vmatpush1.msra.mxu0 0.0
    %950 = vmatprep.subr.mxu0 0.0
    %951 = vmatpush1.msra.mxu0 0.0
    %952 = vmatprep.subr.mxu0 0.0
    %953 = vmatpush1.msra.mxu0 0.0
    %954 = vmatprep.subr.mxu0 0.0
    %955 = vmatpush1.msra.mxu0 0.0
    %956 = vmatprep.subr.mxu0 0.0
    %957 = vmatpush1.msra.mxu0 0.0
    %958 = vmatprep.subr.mxu0 0.0
    %959 = vmatpush1.msra.mxu0 0.0
    %960 = vmatprep.subr.mxu0 0.0
    %961 = vmatpush1.msra.mxu0 0.0
    %962 = vmatprep.subr.mxu0 0.0
    %963 = vmatpush1.msra.mxu0 0.0
    %964 = vmatprep.subr.mxu0 0.0
    %965 = vmatpush1.msra.mxu0 0.0
    %966 = vmatprep.subr.mxu0 0.0
    %967 = vmatpush1.msra.mxu0 0.0
    %968 = vmatprep.subr.mxu0 0.0
    %969 = vmatpush1.msra.mxu0 0.0
    %970 = vmatprep.mubr.f32.mxu0 0.0
    %971 = vmatmul.mubr.f32.gmra.mrb[0].mxu0 %v904
    %v972 = vpop.f32.mrb[0].mxu0
    %v973 = vadd.f32 0.0, %v972
    %v974 = vpop.f32.mrb[0].mxu0
    %v975 = vadd.f32 0.0, %v974
    %976 = vdwg.mxu0
    %v979 = vrot.slane %v973, 4
    %v980 = vrot.slane %v975, 4
    %v983 = vadd.f32 %v164, %v979
    %v984 = vadd.f32 %v166, %v980
    %v985 = vxor.u32 %v983, 2147483648
    %v986 = vmul.f32 %v985, 1.442695
    %v987 = vpow.pop %v986
    %v988 = vadd.f32 %v987, 1.0
    %v989 = vrcp.pop %v988
    %v990 = vmul.f32 1.0, %v989
    %v991 = vtanh.pop %v984
    %v992 = vxor.u32 %v984, 2147483648
    %v993 = vmul.f32 %v992, 1.442695
    %v994 = vpow.pop %v993
    %v995 = vadd.f32 %v994, 1.0
    %v996 = vrcp.pop %v995
    %v997 = vmul.f32 1.0, %v996
    %v999 = vrot.slane %v901, 6
    %1000 = vrot.lane.b32.xlu0 %v999, 64
    %v1001 = vpop.permute.xlu0 %1000
    %v1003 = vmul.f32 %v990, %v1001
    %v1004 = vmul.f32 %v990, %v991
    %1006 = vrot.lane.b32.xlu0 %v1004, 64
    %v1007 = vpop.permute.xlu0 %1006
    %v1009 = vadd.f32 %v1003, %v1007
    %v1010 = vtanh.pop %v1009
    %v1011 = vmul.f32 %v997, %v1010
    %1013 = vrot.lane.b32.xlu0 %v1011, 64
    %v1014 = vpop.permute.xlu0 %1013
    %v1016 = vrot.slane %v895, 6
    %v1018 = vsel %vm767, %v1014, %v1016
    %1020 = vrot.lane.b32.xlu0 %v1009, 64
    %v1021 = vpop.permute.xlu0 %1020
    %v1024 = vsel %vm767, %v1021, %v999
    %v1026 = vrot.slane %v1018, 4
    %v1027 = vsel %vm84, %v1026, 0
    %1029 = vmatprep.subr.mxu0 %v171
    %1030 = vmatpush1.msra.mxu0 %v170
    %1031 = vmatprep.subr.mxu0 %v173
    %1032 = vmatpush1.msra.mxu0 %v172
    %1033 = vmatprep.subr.mxu0 %v175
    %1034 = vmatpush1.msra.mxu0 %v174
    %1035 = vmatprep.subr.mxu0 %v177
    %1036 = vmatpush1.msra.mxu0 %v176
    %1037 = vmatprep.subr.mxu0 %v179
    %1038 = vmatpush1.msra.mxu0 %v178
    %1039 = vmatprep.subr.mxu0 %v181
    %1040 = vmatpush1.msra.mxu0 %v180
    %1041 = vmatprep.subr.mxu0 %v183
    %1042 = vmatpush1.msra.mxu0 %v182
    %1043 = vmatprep.subr.mxu0 %v185
    %1044 = vmatpush1.msra.mxu0 %v184
    %1045 = vmatprep.subr.mxu0 0.0
    %1046 = vmatpush1.msra.mxu0 0.0
    %1047 = vmatprep.subr.mxu0 0.0
    %1048 = vmatpush1.msra.mxu0 0.0
    %1049 = vmatprep.subr.mxu0 0.0
    %1050 = vmatpush1.msra.mxu0 0.0
    %1051 = vmatprep.subr.mxu0 0.0
    %1052 = vmatpush1.msra.mxu0 0.0
    %1053 = vmatprep.subr.mxu0 0.0
    %1054 = vmatpush1.msra.mxu0 0.0
    %1055 = vmatprep.subr.mxu0 0.0
    %1056 = vmatpush1.msra.mxu0 0.0
    %1057 = vmatprep.subr.mxu0 0.0
    %1058 = vmatpush1.msra.mxu0 0.0
    %1059 = vmatprep.subr.mxu0 0.0
    %1060 = vmatpush1.msra.mxu0 0.0
    %1061 = vmatprep.subr.mxu0 0.0
    %1062 = vmatpush1.msra.mxu0 0.0
    %1063 = vmatprep.subr.mxu0 0.0
    %1064 = vmatpush1.msra.mxu0 0.0
    %1065 = vmatprep.subr.mxu0 0.0
    %1066 = vmatpush1.msra.mxu0 0.0
    %1067 = vmatprep.subr.mxu0 0.0
    %1068 = vmatpush1.msra.mxu0 0.0
    %1069 = vmatprep.subr.mxu0 0.0
    %1070 = vmatpush1.msra.mxu0 0.0
    %1071 = vmatprep.subr.mxu0 0.0
    %1072 = vmatpush1.msra.mxu0 0.0
    %1073 = vmatprep.subr.mxu0 0.0
    %1074 = vmatpush1.msra.mxu0 0.0
    %1075 = vmatprep.subr.mxu0 0.0
    %1076 = vmatpush1.msra.mxu0 0.0
    %1077 = vmatprep.subr.mxu0 0.0
    %1078 = vmatpush1.msra.mxu0 0.0
    %1079 = vmatprep.subr.mxu0 0.0
    %1080 = vmatpush1.msra.mxu0 0.0
    %1081 = vmatprep.subr.mxu0 0.0
    %1082 = vmatpush1.msra.mxu0 0.0
    %1083 = vmatprep.subr.mxu0 0.0
    %1084 = vmatpush1.msra.mxu0 0.0
    %1085 = vmatprep.subr.mxu0 0.0
    %1086 = vmatpush1.msra.mxu0 0.0
    %1087 = vmatprep.subr.mxu0 0.0
    %1088 = vmatpush1.msra.mxu0 0.0
    %1089 = vmatprep.subr.mxu0 0.0
    %1090 = vmatpush1.msra.mxu0 0.0
    %1091 = vmatprep.subr.mxu0 0.0
    %1092 = vmatpush1.msra.mxu0 0.0
    %1093 = vmatprep.mubr.f32.mxu0 0.0
    %1094 = vmatmul.mubr.f32.gmra.mrb[0].mxu0 %v1027
    %v1095 = vpop.f32.mrb[0].mxu0
    %v1096 = vadd.f32 0.0, %v1095
    %v1097 = vpop.f32.mrb[0].mxu0
    %v1098 = vadd.f32 0.0, %v1097
    %1099 = vdwg.mxu0
    %v1102 = vrot.slane %v1096, 2
    %v1103 = vrot.slane %v1098, 2
    %v1106 = vadd.f32 %v164, %v1102
    %v1107 = vadd.f32 %v166, %v1103
    %v1108 = vxor.u32 %v1106, 2147483648
    %v1109 = vmul.f32 %v1108, 1.442695
    %v1110 = vpow.pop %v1109
    %v1111 = vadd.f32 %v1110, 1.0
    %v1112 = vrcp.pop %v1111
    %v1113 = vmul.f32 1.0, %v1112
    %v1114 = vtanh.pop %v1107
    %v1116 = vrot.slane %v1024, 6
    %1117 = vrot.lane.b32.xlu0 %v1116, 64
    %v1118 = vpop.permute.xlu0 %1117
    %v1120 = vmul.f32 %v1113, %v1118
    %v1121 = vmul.f32 %v1113, %v1114
    %1123 = vrot.lane.b32.xlu0 %v1121, 64
    %v1124 = vpop.permute.xlu0 %1123
    %v1126 = vadd.f32 %v1120, %v1124
    %1128 = vrot.lane.b32.xlu0 %v1126, 64
    %v1129 = vpop.permute.xlu0 %1128
    %v1132 = vsel %vm767, %v1129, %v1116
    %v1133 = vld [vmem:[%s2] sm:$0xff]
    %v1134 = vld [vmem:[%s2 + $0x8] sm:$0xff]
    %v1135 = vld [vmem:[%s2 + $0x10] sm:$0xff]
    %v1136 = vld [vmem:[%s2 + $0x18] sm:$0xff]
    %v1137 = vmul.f32 %v1133, %v1133
    %v1138 = vmul.f32 %v1134, %v1134
    %v1139 = vmul.f32 %v1135, %v1135
    %v1140 = vmul.f32 %v1136, %v1136
    %v1141 = vsel %vm84, %v1137, 0.0
    %1142 = vadd.xlane.f32.xlu0 %v1141
    %v1143 = vpop.xlane.xlu0 %1142
    %v1144 = vsel %vm84, %v1138, 0.0
    %1145 = vadd.xlane.f32.xlu0 %v1144
    %v1146 = vpop.xlane.xlu0 %1145
    %v1147 = vsel %vm84, %v1139, 0.0
    %1148 = vadd.xlane.f32.xlu0 %v1147
    %v1149 = vpop.xlane.xlu0 %1148
    %v1150 = vsel %vm84, %v1140, 0.0
    %1151 = vadd.xlane.f32.xlu0 %v1150
    %v1152 = vpop.xlane.xlu0 %1151
    %v1153 = vrsqrt.pop %v1143
    %v1154 = vmul.f32 %v1143, %v1153
    %vm1155 = vcmp.eq.f32.partialorder %v1143, inf
    %v1156 = vsel %vm1155, %v1143, %v1154
    %vm1157 = vcmp.eq.f32.partialorder %v1143, 0.0
    %v1158 = vand.u32 %v1143, 2147483648
    %v1159 = vsel %vm1157, %v1158, %v1156
    %v1160 = vrsqrt.pop %v1146
    %v1161 = vmul.f32 %v1146, %v1160
    %vm1162 = vcmp.eq.f32.partialorder %v1146, inf
    %v1163 = vsel %vm1162, %v1146, %v1161
    %vm1164 = vcmp.eq.f32.partialorder %v1146, 0.0
    %v1165 = vand.u32 %v1146, 2147483648
    %v1166 = vsel %vm1164, %v1165, %v1163
    %v1167 = vrsqrt.pop %v1149
    %v1168 = vmul.f32 %v1149, %v1167
    %vm1169 = vcmp.eq.f32.partialorder %v1149, inf
    %v1170 = vsel %vm1169, %v1149, %v1168
    %vm1171 = vcmp.eq.f32.partialorder %v1149, 0.0
    %v1172 = vand.u32 %v1149, 2147483648
    %v1173 = vsel %vm1171, %v1172, %v1170
    %v1174 = vrsqrt.pop %v1152
    %v1175 = vmul.f32 %v1152, %v1174
    %vm1176 = vcmp.eq.f32.partialorder %v1152, inf
    %v1177 = vsel %vm1176, %v1152, %v1175
    %vm1178 = vcmp.eq.f32.partialorder %v1152, 0.0
    %v1179 = vand.u32 %v1152, 2147483648
    %v1180 = vsel %vm1178, %v1179, %v1177
    %v1181 = vmax.f32 %v1159, 1e-12
    %v1182 = vmax.f32 %v1166, 1e-12
    %v1183 = vmax.f32 %v1173, 1e-12
    %v1184 = vmax.f32 %v1180, 1e-12
    %v1185 = vrcp.pop %v1181
    %v1186 = vmul.f32 %v1133, %v1185
    %v1187 = vrcp.pop %v1182
    %v1188 = vmul.f32 %v1134, %v1187
    %v1189 = vrcp.pop %v1183
    %v1190 = vmul.f32 %v1135, %v1189
    %v1191 = vrcp.pop %v1184
    %v1192 = vmul.f32 %v1136, %v1191
    %v1193 = vld [vmem:[%s6] sm:$0xff]
    %v1194 = vld [vmem:[%s6 + $0x8] sm:$0xff]
    %v1195 = vld [vmem:[%s6 + $0x10] sm:$0xff]
    %v1196 = vld [vmem:[%s6 + $0x18] sm:$0xff]
    %v1197 = vld [vmem:[%s6 + $0x20] sm:$0xff]
    %v1198 = vld [vmem:[%s6 + $0x28] sm:$0xff]
    %v1199 = vld [vmem:[%s6 + $0x30] sm:$0xff]
    %v1200 = vld [vmem:[%s6 + $0x38] sm:$0xff]
    %v1202 = vsel %vm84, %v1186, 0
    %v1205 = vsel %vm84, %v1188, 0
    %v1208 = vsel %vm84, %v1190, 0
    %v1211 = vsel %vm84, %v1192, 0
    %1213 = vmatprep.subr.mxu0 0.0
    %1214 = vmatpush1.msra.mxu0 %v1193
    %1215 = vmatprep.subr.mxu0 0.0
    %1216 = vmatpush1.msra.mxu0 %v1194
    %1217 = vmatprep.subr.mxu0 0.0
    %1218 = vmatpush1.msra.mxu0 %v1195
    %1219 = vmatprep.subr.mxu0 0.0
    %1220 = vmatpush1.msra.mxu0 %v1196
    %1221 = vmatprep.subr.mxu0 0.0
    %1222 = vmatpush1.msra.mxu0 %v1197
    %1223 = vmatprep.subr.mxu0 0.0
    %1224 = vmatpush1.msra.mxu0 %v1198
    %1225 = vmatprep.subr.mxu0 0.0
    %1226 = vmatpush1.msra.mxu0 %v1199
    %1227 = vmatprep.subr.mxu0 0.0
    %1228 = vmatpush1.msra.mxu0 %v1200
    %1229 = vmatprep.subr.mxu0 0.0
    %1230 = vmatpush1.msra.mxu0 0.0
    %1231 = vmatprep.subr.mxu0 0.0
    %1232 = vmatpush1.msra.mxu0 0.0
    %1233 = vmatprep.subr.mxu0 0.0
    %1234 = vmatpush1.msra.mxu0 0.0
    %1235 = vmatprep.subr.mxu0 0.0
    %1236 = vmatpush1.msra.mxu0 0.0
    %1237 = vmatprep.subr.mxu0 0.0
    %1238 = vmatpush1.msra.mxu0 0.0
    %1239 = vmatprep.subr.mxu0 0.0
    %1240 = vmatpush1.msra.mxu0 0.0
    %1241 = vmatprep.subr.mxu0 0.0
    %1242 = vmatpush1.msra.mxu0 0.0
    %1243 = vmatprep.subr.mxu0 0.0
    %1244 = vmatpush1.msra.mxu0 0.0
    %1245 = vmatprep.subr.mxu0 0.0
    %1246 = vmatpush1.msra.mxu0 0.0
    %1247 = vmatprep.subr.mxu0 0.0
    %1248 = vmatpush1.msra.mxu0 0.0
    %1249 = vmatprep.subr.mxu0 0.0
    %1250 = vmatpush1.msra.mxu0 0.0
    %1251 = vmatprep.subr.mxu0 0.0
    %1252 = vmatpush1.msra.mxu0 0.0
    %1253 = vmatprep.subr.mxu0 0.0
    %1254 = vmatpush1.msra.mxu0 0.0
    %1255 = vmatprep.subr.mxu0 0.0
    %1256 = vmatpush1.msra.mxu0 0.0
    %1257 = vmatprep.subr.mxu0 0.0
    %1258 = vmatpush1.msra.mxu0 0.0
    %1259 = vmatprep.subr.mxu0 0.0
    %1260 = vmatpush1.msra.mxu0 0.0
    %1261 = vmatprep.subr.mxu0 0.0
    %1262 = vmatpush1.msra.mxu0 0.0
    %1263 = vmatprep.subr.mxu0 0.0
    %1264 = vmatpush1.msra.mxu0 0.0
    %1265 = vmatprep.subr.mxu0 0.0
    %1266 = vmatpush1.msra.mxu0 0.0
    %1267 = vmatprep.subr.mxu0 0.0
    %1268 = vmatpush1.msra.mxu0 0.0
    %1269 = vmatprep.subr.mxu0 0.0
    %1270 = vmatpush1.msra.mxu0 0.0
    %1271 = vmatprep.subr.mxu0 0.0
    %1272 = vmatpush1.msra.mxu0 0.0
    %1273 = vmatprep.subr.mxu0 0.0
    %1274 = vmatpush1.msra.mxu0 0.0
    %1275 = vmatprep.subr.mxu0 0.0
    %1276 = vmatpush1.msra.mxu0 0.0
    %1277 = vmatprep.mubr.f32.mxu0 0.0
    %1278 = vmatmul.mubr.f32.gmra.mrb[0].mxu0 %v1202
    %v1279 = vpop.f32.mrb[0].mxu0
    %v1280 = vadd.f32 0.0, %v1279
    %v1281 = vpop.f32.mrb[0].mxu0
    %1282 = vmatprep.mubr.f32.mxu0 0.0
    %1283 = vmatmul.mubr.f32.gmra.mrb[0].mxu0 %v1205
    %v1284 = vpop.f32.mrb[0].mxu0
    %v1285 = vadd.f32 0.0, %v1284
    %v1286 = vpop.f32.mrb[0].mxu0
    %1287 = vmatprep.mubr.f32.mxu0 0.0
    %1288 = vmatmul.mubr.f32.gmra.mrb[0].mxu0 %v1208
    %v1289 = vpop.f32.mrb[0].mxu0
    %v1290 = vadd.f32 0.0, %v1289
    %v1291 = vpop.f32.mrb[0].mxu0
    %1292 = vmatprep.mubr.f32.mxu0 0.0
    %1293 = vmatmul.mubr.f32.gmra.mrb[0].mxu0 %v1211
    %v1294 = vpop.f32.mrb[0].mxu0
    %v1295 = vadd.f32 0.0, %v1294
    %v1296 = vpop.f32.mrb[0].mxu0
    %1297 = vdwg.mxu0
    %v1298 = vld [vmem:[%s7] sm:$0xff]
    %v1299 = vld [vmem:[%s7 + $0x8] sm:$0xff]
    %v1300 = vld [vmem:[%s7 + $0x10] sm:$0xff]
    %v1301 = vld [vmem:[%s7 + $0x18] sm:$0xff]
    %v1302 = vld [vmem:[%s7 + $0x20] sm:$0xff]
    %v1303 = vld [vmem:[%s7 + $0x28] sm:$0xff]
    %v1304 = vld [vmem:[%s7 + $0x30] sm:$0xff]
    %v1305 = vld [vmem:[%s7 + $0x38] sm:$0xff]
    %v1306 = vld [vmem:[%s8] sm:$0x1]
    %v1308 = vlaneseq
    %v1309 = vshrl.u32 %v1308, 7
    %v1310 = vsub.s32 0, %v1309
    %v1311 = vrot.slane %v1306, %v1310
    %v1314 = vrot.slane %v1132, 6
    %v1315 = vsel %vm84, %v1314, 0
    %1317 = vmatprep.subr.mxu0 0.0
    %1318 = vmatpush1.msra.mxu0 %v1298
    %1319 = vmatprep.subr.mxu0 0.0
    %1320 = vmatpush1.msra.mxu0 %v1299
    %1321 = vmatprep.subr.mxu0 0.0
    %1322 = vmatpush1.msra.mxu0 %v1300
    %1323 = vmatprep.subr.mxu0 0.0
    %1324 = vmatpush1.msra.mxu0 %v1301
    %1325 = vmatprep.subr.mxu0 0.0
    %1326 = vmatpush1.msra.mxu0 %v1302
    %1327 = vmatprep.subr.mxu0 0.0
    %1328 = vmatpush1.msra.mxu0 %v1303
    %1329 = vmatprep.subr.mxu0 0.0
    %1330 = vmatpush1.msra.mxu0 %v1304
    %1331 = vmatprep.subr.mxu0 0.0
    %1332 = vmatpush1.msra.mxu0 %v1305
    %1333 = vmatprep.subr.mxu0 0.0
    %1334 = vmatpush1.msra.mxu0 0.0
    %1335 = vmatprep.subr.mxu0 0.0
    %1336 = vmatpush1.msra.mxu0 0.0
    %1337 = vmatprep.subr.mxu0 0.0
    %1338 = vmatpush1.msra.mxu0 0.0
    %1339 = vmatprep.subr.mxu0 0.0
    %1340 = vmatpush1.msra.mxu0 0.0
    %1341 = vmatprep.subr.mxu0 0.0
    %1342 = vmatpush1.msra.mxu0 0.0
    %1343 = vmatprep.subr.mxu0 0.0
    %1344 = vmatpush1.msra.mxu0 0.0
    %1345 = vmatprep.subr.mxu0 0.0
    %1346 = vmatpush1.msra.mxu0 0.0
    %1347 = vmatprep.subr.mxu0 0.0
    %1348 = vmatpush1.msra.mxu0 0.0
    %1349 = vmatprep.subr.mxu0 0.0
    %1350 = vmatpush1.msra.mxu0 0.0
    %1351 = vmatprep.subr.mxu0 0.0
    %1352 = vmatpush1.msra.mxu0 0.0
    %1353 = vmatprep.subr.mxu0 0.0
    %1354 = vmatpush1.msra.mxu0 0.0
    %1355 = vmatprep.subr.mxu0 0.0
    %1356 = vmatpush1.msra.mxu0 0.0
    %1357 = vmatprep.subr.mxu0 0.0
    %1358 = vmatpush1.msra.mxu0 0.0
    %1359 = vmatprep.subr.mxu0 0.0
    %1360 = vmatpush1.msra.mxu0 0.0
    %1361 = vmatprep.subr.mxu0 0.0
    %1362 = vmatpush1.msra.mxu0 0.0
    %1363 = vmatprep.subr.mxu0 0.0
    %1364 = vmatpush1.msra.mxu0 0.0
    %1365 = vmatprep.subr.mxu0 0.0
    %1366 = vmatpush1.msra.mxu0 0.0
    %1367 = vmatprep.subr.mxu0 0.0
    %1368 = vmatpush1.msra.mxu0 0.0
    %1369 = vmatprep.subr.mxu0 0.0
    %1370 = vmatpush1.msra.mxu0 0.0
    %1371 = vmatprep.subr.mxu0 0.0
    %1372 = vmatpush1.msra.mxu0 0.0
    %1373 = vmatprep.subr.mxu0 0.0
    %1374 = vmatpush1.msra.mxu0 0.0
    %1375 = vmatprep.subr.mxu0 0.0
    %1376 = vmatpush1.msra.mxu0 0.0
    %1377 = vmatprep.subr.mxu0 0.0
    %1378 = vmatpush1.msra.mxu0 0.0
    %1379 = vmatprep.subr.mxu0 0.0
    %1380 = vmatpush1.msra.mxu0 0.0
    %1381 = vmatprep.mubr.f32.mxu0 0.0
    %1382 = vmatmul.mubr.f32.gmra.mrb[0].mxu0 %v1315
    %v1383 = vpop.f32.mrb[0].mxu0
    %v1384 = vadd.f32 %v1311, %v1383
    %v1385 = vpop.f32.mrb[0].mxu0
    %1386 = vdwg.mxu0
    %v1387 = vld [vmem:[%s9] sm:$0xff]
    %v1388 = vld [vmem:[%s9 + $0x8] sm:$0xff]
    %v1389 = vld [vmem:[%s9 + $0x10] sm:$0xff]
    %v1390 = vld [vmem:[%s9 + $0x18] sm:$0xff]
    %v1391 = vld [vmem:[%s10] sm:$0x1]
    %v1392 = vlaneseq
    %v1393 = vshrl.u32 %v1392, 7
    %v1394 = vsub.s32 0, %v1393
    %v1395 = vrot.slane %v1384, %v1394
    %v1396 = vadd.f32 %v1280, %v1395
    %v1397 = vadd.f32 %v1285, %v1395
    %v1398 = vmax.f32 %v1396, 0.0
    %v1399 = vmax.f32 %v1397, 0.0
    %v1401 = vlaneseq
    %v1402 = vshrl.u32 %v1401, 7
    %v1403 = vsub.s32 0, %v1402
    %v1404 = vrot.slane %v1391, %v1403
    %vm1406 = vcmask 261120
    %v1408 = vsel %vm1406, %v1398, 0
    %v1411 = vsel %vm1406, %v1399, 0
    %1413 = vmatprep.subr.mxu0 0.0
    %1414 = vmatpush1.msra.mxu0 %v1387
    %1415 = vmatprep.subr.mxu0 0.0
    %1416 = vmatpush1.msra.mxu0 %v1388
    %1417 = vmatprep.subr.mxu0 0.0
    %1418 = vmatpush1.msra.mxu0 %v1389
    %1419 = vmatprep.subr.mxu0 0.0
    %1420 = vmatpush1.msra.mxu0 %v1390
    %1421 = vmatprep.subr.mxu0 0.0
    %1422 = vmatpush1.msra.mxu0 0.0
    %1423 = vmatprep.subr.mxu0 0.0
    %1424 = vmatpush1.msra.mxu0 0.0
    %1425 = vmatprep.subr.mxu0 0.0
    %1426 = vmatpush1.msra.mxu0 0.0
    %1427 = vmatprep.subr.mxu0 0.0
    %1428 = vmatpush1.msra.mxu0 0.0
    %1429 = vmatprep.subr.mxu0 0.0
    %1430 = vmatpush1.msra.mxu0 0.0
    %1431 = vmatprep.subr.mxu0 0.0
    %1432 = vmatpush1.msra.mxu0 0.0
    %1433 = vmatprep.subr.mxu0 0.0
    %1434 = vmatpush1.msra.mxu0 0.0
    %1435 = vmatprep.subr.mxu0 0.0
    %1436 = vmatpush1.msra.mxu0 0.0
    %1437 = vmatprep.subr.mxu0 0.0
    %1438 = vmatpush1.msra.mxu0 0.0
    %1439 = vmatprep.subr.mxu0 0.0
    %1440 = vmatpush1.msra.mxu0 0.0
    %1441 = vmatprep.subr.mxu0 0.0
    %1442 = vmatpush1.msra.mxu0 0.0
    %1443 = vmatprep.subr.mxu0 0.0
    %1444 = vmatpush1.msra.mxu0 0.0
    %1445 = vmatprep.subr.mxu0 0.0
    %1446 = vmatpush1.msra.mxu0 0.0
    %1447 = vmatprep.subr.mxu0 0.0
    %1448 = vmatpush1.msra.mxu0 0.0
    %1449 = vmatprep.subr.mxu0 0.0
    %1450 = vmatpush1.msra.mxu0 0.0
    %1451 = vmatprep.subr.mxu0 0.0
    %1452 = vmatpush1.msra.mxu0 0.0
    %1453 = vmatprep.subr.mxu0 0.0
    %1454 = vmatpush1.msra.mxu0 0.0
    %1455 = vmatprep.subr.mxu0 0.0
    %1456 = vmatpush1.msra.mxu0 0.0
    %1457 = vmatprep.subr.mxu0 0.0
    %1458 = vmatpush1.msra.mxu0 0.0
    %1459 = vmatprep.subr.mxu0 0.0
    %1460 = vmatpush1.msra.mxu0 0.0
    %1461 = vmatprep.subr.mxu0 0.0
    %1462 = vmatpush1.msra.mxu0 0.0
    %1463 = vmatprep.subr.mxu0 0.0
    %1464 = vmatpush1.msra.mxu0 0.0
    %1465 = vmatprep.subr.mxu0 0.0
    %1466 = vmatpush1.msra.mxu0 0.0
    %1467 = vmatprep.subr.mxu0 0.0
    %1468 = vmatpush1.msra.mxu0 0.0
    %1469 = vmatprep.subr.mxu0 0.0
    %1470 = vmatpush1.msra.mxu0 0.0
    %1471 = vmatprep.subr.mxu0 0.0
    %1472 = vmatpush1.msra.mxu0 0.0
    %1473 = vmatprep.subr.mxu0 0.0
    %1474 = vmatpush1.msra.mxu0 0.0
    %1475 = vmatprep.subr.mxu0 0.0
    %1476 = vmatpush1.msra.mxu0 0.0
    %1477 = vmatprep.mubr.f32.mxu0 0.0
    %1478 = vmatmul.mubr.f32.gmra.mrb[0].mxu0 %v1408
    %v1479 = vpop.f32.mrb[0].mxu0
    %v1480 = vadd.f32 %v1404, %v1479
    %v1481 = vpop.f32.mrb[0].mxu0
    %1482 = vmatprep.mubr.f32.mxu0 0.0
    %1483 = vmatmul.mubr.f32.gmra.mrb[0].mxu0 %v1411
    %v1484 = vpop.f32.mrb[0].mxu0
    %v1485 = vadd.f32 %v1404, %v1484
    %v1486 = vpop.f32.mrb[0].mxu0
    %1487 = vdwg.mxu0
    %vm1488 = vcmask 15360
    %v1489 = vsel %vm1488, %v1480, -inf
    %v1490 = vsel %vm1488, %v1485, -inf
    %v1491 = vmax.f32 %v1489, %v1490
    %v1492 = vrot.slane %v1491, 4
    %v1493 = vmax.f32 %v1491, %v1492
    %v1494 = vrot.slane %v1493, 2
    %v1495 = vmax.f32 %v1493, %v1494
    %v1496 = vrot.slane %v1495, 1
    %v1497 = vmax.f32 %v1495, %v1496
    %v1498 = vsub.f32 %v1480, %v1497
    %v1499 = vsub.f32 %v1485, %v1497
    %v1500 = vmul.f32 %v1498, 1.442695
    %v1501 = vpow.pop %v1500
    %v1502 = vmul.f32 %v1499, 1.442695
    %v1503 = vpow.pop %v1502
    %v1504 = vsel %vm1488, %v1501, 0.0
    %v1505 = vsel %vm1488, %v1503, 0.0
    %v1506 = vadd.f32 %v1504, %v1505
    %v1507 = vrot.slane %v1506, 4
    %v1508 = vadd.f32 %v1506, %v1507
    %v1509 = vrot.slane %v1508, 2
    %v1510 = vadd.f32 %v1508, %v1509
    %v1511 = vrot.slane %v1510, 1
    %v1512 = vadd.f32 %v1510, %v1511
    %v1513 = vrcp.pop %v1512
    %v1514 = vmul.f32 %v1501, %v1513
    %v1515 = vmul.f32 %v1503, %v1513
    %1516 = vxpose.xlu0.b32.start [1/16] %v1514, 128
    %1517 = vxpose.xlu0.b32.cont [2/16] %v1515, 128
    %1518 = vxpose.xlu0.b32.cont [3/16] 0.0, 128
    %1519 = vxpose.xlu0.b32.cont [4/16] 0.0, 128
    %1520 = vxpose.xlu0.b32.cont [5/16] 0.0, 128
    %1521 = vxpose.xlu0.b32.cont [6/16] 0.0, 128
    %1522 = vxpose.xlu0.b32.cont [7/16] 0.0, 128
    %1523 = vxpose.xlu0.b32.cont [8/16] 0.0, 128
    %1524 = vxpose.xlu0.b32.cont [9/16] 0.0, 128
    %1525 = vxpose.xlu0.b32.cont [10/16] 0.0, 128
    %1526 = vxpose.xlu0.b32.cont [11/16] 0.0, 128
    %1527 = vxpose.xlu0.b32.cont [12/16] 0.0, 128
    %1528 = vxpose.xlu0.b32.cont [13/16] 0.0, 128
    %1529 = vxpose.xlu0.b32.cont [14/16] 0.0, 128
    %1530 = vxpose.xlu0.b32.cont [15/16] 0.0, 128
    %1531 = vxpose.xlu0.b32.end [16/16] 0.0, 128
    %v1532 = vpop.trf.xlu0
    %v1533 = vpop.trf.xlu0
    %v1534 = vpop.trf.xlu0
    %v1535 = vpop.trf.xlu0
    %v1536 = vpop.trf.xlu0
    %v1537 = vpop.trf.xlu0
    %v1538 = vpop.trf.xlu0
    %v1539 = vpop.trf.xlu0
    %v1540 = vpop.trf.xlu0
    %v1541 = vpop.trf.xlu0
    %v1542 = vpop.trf.xlu0
    %v1543 = vpop.trf.xlu0
    %v1544 = vpop.trf.xlu0
    %v1545 = vpop.trf.xlu0
    %v1546 = vpop.trf.xlu0
    %v1547 = vpop.trf.xlu0
    %vm1548 = vcmask 130048
    %v1550 = vsel %vm1548, %v1532, 0
    %1552 = vmatprep.subr.mxu0 0.0
    %1553 = vmatpush1.msra.mxu0 %v1186
    %1554 = vmatprep.subr.mxu0 0.0
    %1555 = vmatpush1.msra.mxu0 %v1188
    %1556 = vmatprep.subr.mxu0 0.0
    %1557 = vmatpush1.msra.mxu0 0.0
    %1558 = vmatprep.subr.mxu0 0.0
    %1559 = vmatpush1.msra.mxu0 0.0
    %1560 = vmatprep.subr.mxu0 0.0
    %1561 = vmatpush1.msra.mxu0 0.0
    %1562 = vmatprep.subr.mxu0 0.0
    %1563 = vmatpush1.msra.mxu0 0.0
    %1564 = vmatprep.subr.mxu0 0.0
    %1565 = vmatpush1.msra.mxu0 0.0
    %1566 = vmatprep.subr.mxu0 0.0
    %1567 = vmatpush1.msra.mxu0 0.0
    %1568 = vmatprep.subr.mxu0 0.0
    %1569 = vmatpush1.msra.mxu0 0.0
    %1570 = vmatprep.subr.mxu0 0.0
    %1571 = vmatpush1.msra.mxu0 0.0
    %1572 = vmatprep.subr.mxu0 0.0
    %1573 = vmatpush1.msra.mxu0 0.0
    %1574 = vmatprep.subr.mxu0 0.0
    %1575 = vmatpush1.msra.mxu0 0.0
    %1576 = vmatprep.subr.mxu0 0.0
    %1577 = vmatpush1.msra.mxu0 0.0
    %1578 = vmatprep.subr.mxu0 0.0
    %1579 = vmatpush1.msra.mxu0 0.0
    %1580 = vmatprep.subr.mxu0 0.0
    %1581 = vmatpush1.msra.mxu0 0.0
    %1582 = vmatprep.subr.mxu0 0.0
    %1583 = vmatpush1.msra.mxu0 0.0
    %1584 = vmatprep.subr.mxu0 0.0
    %1585 = vmatpush1.msra.mxu0 0.0
    %1586 = vmatprep.subr.mxu0 0.0
    %1587 = vmatpush1.msra.mxu0 0.0
    %1588 = vmatprep.subr.mxu0 0.0
    %1589 = vmatpush1.msra.mxu0 0.0
    %1590 = vmatprep.subr.mxu0 0.0
    %1591 = vmatpush1.msra.mxu0 0.0
    %1592 = vmatprep.subr.mxu0 0.0
    %1593 = vmatpush1.msra.mxu0 0.0
    %1594 = vmatprep.subr.mxu0 0.0
    %1595 = vmatpush1.msra.mxu0 0.0
    %1596 = vmatprep.subr.mxu0 0.0
    %1597 = vmatpush1.msra.mxu0 0.0
    %1598 = vmatprep.subr.mxu0 0.0
    %1599 = vmatpush1.msra.mxu0 0.0
    %1600 = vmatprep.subr.mxu0 0.0
    %1601 = vmatpush1.msra.mxu0 0.0
    %1602 = vmatprep.subr.mxu0 0.0
    %1603 = vmatpush1.msra.mxu0 0.0
    %1604 = vmatprep.subr.mxu0 0.0
    %1605 = vmatpush1.msra.mxu0 0.0
    %1606 = vmatprep.subr.mxu0 0.0
    %1607 = vmatpush1.msra.mxu0 0.0
    %1608 = vmatprep.subr.mxu0 0.0
    %1609 = vmatpush1.msra.mxu0 0.0
    %1610 = vmatprep.subr.mxu0 0.0
    %1611 = vmatpush1.msra.mxu0 0.0
    %1612 = vmatprep.subr.mxu0 0.0
    %1613 = vmatpush1.msra.mxu0 0.0
    %1614 = vmatprep.subr.mxu0 0.0
    %1615 = vmatpush1.msra.mxu0 0.0
    %1616 = vmatprep.mubr.f32.mxu0 0.0
    %1617 = vmatmul.mubr.f32.gmra.mrb[0].mxu0 %v1550
    %v1618 = vpop.f32.mrb[0].mxu0
    %v1619 = vadd.f32 0.0, %v1618
    %v1620 = vpop.f32.mrb[0].mxu0
    %1621 = vdwg.mxu0
    %v1623 = vrot.slane %v1619, 1
    %1624 = vrot.lane.b32.xlu0 %v1623, 64
    %v1625 = vpop.permute.xlu0 %1624
    %v1627 = vsel %vm84, %v1619, %v1625
    %v1628 = vlaneseq
    %v1629 = vshrl.u32 %v1628, 7
    %v1630 = vsub.s32 1, %v1629
    %v1631 = vrot.slane %v1384, %v1630
    %v1632 = vadd.f32 %v1290, %v1631
    %v1633 = vadd.f32 %v1295, %v1631
    %v1634 = vmax.f32 %v1632, 0.0
    %v1635 = vmax.f32 %v1633, 0.0
    %v1637 = vsel %vm1406, %v1634, 0
    %v1640 = vsel %vm1406, %v1635, 0
    %1642 = vmatprep.subr.mxu0 0.0
    %1643 = vmatpush1.msra.mxu0 %v1387
    %1644 = vmatprep.subr.mxu0 0.0
    %1645 = vmatpush1.msra.mxu0 %v1388
    %1646 = vmatprep.subr.mxu0 0.0
    %1647 = vmatpush1.msra.mxu0 %v1389
    %1648 = vmatprep.subr.mxu0 0.0
    %1649 = vmatpush1.msra.mxu0 %v1390
    %1650 = vmatprep.subr.mxu0 0.0
    %1651 = vmatpush1.msra.mxu0 0.0
    %1652 = vmatprep.subr.mxu0 0.0
    %1653 = vmatpush1.msra.mxu0 0.0
    %1654 = vmatprep.subr.mxu0 0.0
    %1655 = vmatpush1.msra.mxu0 0.0
    %1656 = vmatprep.subr.mxu0 0.0
    %1657 = vmatpush1.msra.mxu0 0.0
    %1658 = vmatprep.subr.mxu0 0.0
    %1659 = vmatpush1.msra.mxu0 0.0
    %1660 = vmatprep.subr.mxu0 0.0
    %1661 = vmatpush1.msra.mxu0 0.0
    %1662 = vmatprep.subr.mxu0 0.0
    %1663 = vmatpush1.msra.mxu0 0.0
    %1664 = vmatprep.subr.mxu0 0.0
    %1665 = vmatpush1.msra.mxu0 0.0
    %1666 = vmatprep.subr.mxu0 0.0
    %1667 = vmatpush1.msra.mxu0 0.0
    %1668 = vmatprep.subr.mxu0 0.0
    %1669 = vmatpush1.msra.mxu0 0.0
    %1670 = vmatprep.subr.mxu0 0.0
    %1671 = vmatpush1.msra.mxu0 0.0
    %1672 = vmatprep.subr.mxu0 0.0
    %1673 = vmatpush1.msra.mxu0 0.0
    %1674 = vmatprep.subr.mxu0 0.0
    %1675 = vmatpush1.msra.mxu0 0.0
    %1676 = vmatprep.subr.mxu0 0.0
    %1677 = vmatpush1.msra.mxu0 0.0
    %1678 = vmatprep.subr.mxu0 0.0
    %1679 = vmatpush1.msra.mxu0 0.0
    %1680 = vmatprep.subr.mxu0 0.0
    %1681 = vmatpush1.msra.mxu0 0.0
    %1682 = vmatprep.subr.mxu0 0.0
    %1683 = vmatpush1.msra.mxu0 0.0
    %1684 = vmatprep.subr.mxu0 0.0
    %1685 = vmatpush1.msra.mxu0 0.0
    %1686 = vmatprep.subr.mxu0 0.0
    %1687 = vmatpush1.msra.mxu0 0.0
    %1688 = vmatprep.subr.mxu0 0.0
    %1689 = vmatpush1.msra.mxu0 0.0
    %1690 = vmatprep.subr.mxu0 0.0
    %1691 = vmatpush1.msra.mxu0 0.0
    %1692 = vmatprep.subr.mxu0 0.0
    %1693 = vmatpush1.msra.mxu0 0.0
    %1694 = vmatprep.subr.mxu0 0.0
    %1695 = vmatpush1.msra.mxu0 0.0
    %1696 = vmatprep.subr.mxu0 0.0
    %1697 = vmatpush1.msra.mxu0 0.0
    %1698 = vmatprep.subr.mxu0 0.0
    %1699 = vmatpush1.msra.mxu0 0.0
    %1700 = vmatprep.subr.mxu0 0.0
    %1701 = vmatpush1.msra.mxu0 0.0
    %1702 = vmatprep.subr.mxu0 0.0
    %1703 = vmatpush1.msra.mxu0 0.0
    %1704 = vmatprep.subr.mxu0 0.0
    %1705 = vmatpush1.msra.mxu0 0.0
    %1706 = vmatprep.mubr.f32.mxu0 0.0
    %1707 = vmatmul.mubr.f32.gmra.mrb[0].mxu0 %v1637
    %v1708 = vpop.f32.mrb[0].mxu0
    %v1709 = vadd.f32 %v1404, %v1708
    %v1710 = vpop.f32.mrb[0].mxu0
    %1711 = vmatprep.mubr.f32.mxu0 0.0
    %1712 = vmatmul.mubr.f32.gmra.mrb[0].mxu0 %v1640
    %v1713 = vpop.f32.mrb[0].mxu0
    %v1714 = vadd.f32 %v1404, %v1713
    %v1715 = vpop.f32.mrb[0].mxu0
    %1716 = vdwg.mxu0
    %v1717 = vsel %vm1488, %v1709, -inf
    %v1718 = vsel %vm1488, %v1714, -inf
    %v1719 = vmax.f32 %v1717, %v1718
    %v1720 = vrot.slane %v1719, 4
    %v1721 = vmax.f32 %v1719, %v1720
    %v1722 = vrot.slane %v1721, 2
    %v1723 = vmax.f32 %v1721, %v1722
    %v1724 = vrot.slane %v1723, 1
    %v1725 = vmax.f32 %v1723, %v1724
    %v1726 = vsub.f32 %v1709, %v1725
    %v1727 = vsub.f32 %v1714, %v1725
    %v1728 = vmul.f32 %v1726, 1.442695
    %v1729 = vpow.pop %v1728
    %v1730 = vmul.f32 %v1727, 1.442695
    %v1731 = vpow.pop %v1730
    %v1732 = vsel %vm1488, %v1729, 0.0
    %v1733 = vsel %vm1488, %v1731, 0.0
    %v1734 = vadd.f32 %v1732, %v1733
    %v1735 = vrot.slane %v1734, 4
    %v1736 = vadd.f32 %v1734, %v1735
    %v1737 = vrot.slane %v1736, 2
    %v1738 = vadd.f32 %v1736, %v1737
    %v1739 = vrot.slane %v1738, 1
    %v1740 = vadd.f32 %v1738, %v1739
    %v1741 = vrcp.pop %v1740
    %v1742 = vmul.f32 %v1729, %v1741
    %v1743 = vmul.f32 %v1731, %v1741
    %1744 = vxpose.xlu0.b32.start [1/16] %v1742, 128
    %1745 = vxpose.xlu0.b32.cont [2/16] %v1743, 128
    %1746 = vxpose.xlu0.b32.cont [3/16] 0.0, 128
    %1747 = vxpose.xlu0.b32.cont [4/16] 0.0, 128
    %1748 = vxpose.xlu0.b32.cont [5/16] 0.0, 128
    %1749 = vxpose.xlu0.b32.cont [6/16] 0.0, 128
    %1750 = vxpose.xlu0.b32.cont [7/16] 0.0, 128
    %1751 = vxpose.xlu0.b32.cont [8/16] 0.0, 128
    %1752 = vxpose.xlu0.b32.cont [9/16] 0.0, 128
    %1753 = vxpose.xlu0.b32.cont [10/16] 0.0, 128
    %1754 = vxpose.xlu0.b32.cont [11/16] 0.0, 128
    %1755 = vxpose.xlu0.b32.cont [12/16] 0.0, 128
    %1756 = vxpose.xlu0.b32.cont [13/16] 0.0, 128
    %1757 = vxpose.xlu0.b32.cont [14/16] 0.0, 128
    %1758 = vxpose.xlu0.b32.cont [15/16] 0.0, 128
    %1759 = vxpose.xlu0.b32.end [16/16] 0.0, 128
    %v1760 = vpop.trf.xlu0
    %v1761 = vpop.trf.xlu0
    %v1762 = vpop.trf.xlu0
    %v1763 = vpop.trf.xlu0
    %v1764 = vpop.trf.xlu0
    %v1765 = vpop.trf.xlu0
    %v1766 = vpop.trf.xlu0
    %v1767 = vpop.trf.xlu0
    %v1768 = vpop.trf.xlu0
    %v1769 = vpop.trf.xlu0
    %v1770 = vpop.trf.xlu0
    %v1771 = vpop.trf.xlu0
    %v1772 = vpop.trf.xlu0
    %v1773 = vpop.trf.xlu0
    %v1774 = vpop.trf.xlu0
    %v1775 = vpop.trf.xlu0
    %v1777 = vsel %vm1548, %v1760, 0
    %1779 = vmatprep.subr.mxu0 0.0
    %1780 = vmatpush1.msra.mxu0 %v1190
    %1781 = vmatprep.subr.mxu0 0.0
    %1782 = vmatpush1.msra.mxu0 %v1192
    %1783 = vmatprep.subr.mxu0 0.0
    %1784 = vmatpush1.msra.mxu0 0.0
    %1785 = vmatprep.subr.mxu0 0.0
    %1786 = vmatpush1.msra.mxu0 0.0
    %1787 = vmatprep.subr.mxu0 0.0
    %1788 = vmatpush1.msra.mxu0 0.0
    %1789 = vmatprep.subr.mxu0 0.0
    %1790 = vmatpush1.msra.mxu0 0.0
    %1791 = vmatprep.subr.mxu0 0.0
    %1792 = vmatpush1.msra.mxu0 0.0
    %1793 = vmatprep.subr.mxu0 0.0
    %1794 = vmatpush1.msra.mxu0 0.0
    %1795 = vmatprep.subr.mxu0 0.0
    %1796 = vmatpush1.msra.mxu0 0.0
    %1797 = vmatprep.subr.mxu0 0.0
    %1798 = vmatpush1.msra.mxu0 0.0
    %1799 = vmatprep.subr.mxu0 0.0
    %1800 = vmatpush1.msra.mxu0 0.0
    %1801 = vmatprep.subr.mxu0 0.0
    %1802 = vmatpush1.msra.mxu0 0.0
    %1803 = vmatprep.subr.mxu0 0.0
    %1804 = vmatpush1.msra.mxu0 0.0
    %1805 = vmatprep.subr.mxu0 0.0
    %1806 = vmatpush1.msra.mxu0 0.0
    %1807 = vmatprep.subr.mxu0 0.0
    %1808 = vmatpush1.msra.mxu0 0.0
    %1809 = vmatprep.subr.mxu0 0.0
    %1810 = vmatpush1.msra.mxu0 0.0
    %1811 = vmatprep.subr.mxu0 0.0
    %1812 = vmatpush1.msra.mxu0 0.0
    %1813 = vmatprep.subr.mxu0 0.0
    %1814 = vmatpush1.msra.mxu0 0.0
    %1815 = vmatprep.subr.mxu0 0.0
    %1816 = vmatpush1.msra.mxu0 0.0
    %1817 = vmatprep.subr.mxu0 0.0
    %1818 = vmatpush1.msra.mxu0 0.0
    %1819 = vmatprep.subr.mxu0 0.0
    %1820 = vmatpush1.msra.mxu0 0.0
    %1821 = vmatprep.subr.mxu0 0.0
    %1822 = vmatpush1.msra.mxu0 0.0
    %1823 = vmatprep.subr.mxu0 0.0
    %1824 = vmatpush1.msra.mxu0 0.0
    %1825 = vmatprep.subr.mxu0 0.0
    %1826 = vmatpush1.msra.mxu0 0.0
    %1827 = vmatprep.subr.mxu0 0.0
    %1828 = vmatpush1.msra.mxu0 0.0
    %1829 = vmatprep.subr.mxu0 0.0
    %1830 = vmatpush1.msra.mxu0 0.0
    %1831 = vmatprep.subr.mxu0 0.0
    %1832 = vmatpush1.msra.mxu0 0.0
    %1833 = vmatprep.subr.mxu0 0.0
    %1834 = vmatpush1.msra.mxu0 0.0
    %1835 = vmatprep.subr.mxu0 0.0
    %1836 = vmatpush1.msra.mxu0 0.0
    %1837 = vmatprep.subr.mxu0 0.0
    %1838 = vmatpush1.msra.mxu0 0.0
    %1839 = vmatprep.subr.mxu0 0.0
    %1840 = vmatpush1.msra.mxu0 0.0
    %1841 = vmatprep.subr.mxu0 0.0
    %1842 = vmatpush1.msra.mxu0 0.0
    %1843 = vmatprep.mubr.f32.mxu0 0.0
    %1844 = vmatmul.mubr.f32.gmra.mrb[0].mxu0 %v1777
    %v1845 = vpop.f32.mrb[0].mxu0
    %v1846 = vadd.f32 0.0, %v1845
    %v1847 = vpop.f32.mrb[0].mxu0
    %1848 = vdwg.mxu0
    %v1850 = vrot.slane %v1846, 1
    %1851 = vrot.lane.b32.xlu0 %v1850, 64
    %v1852 = vpop.permute.xlu0 %1851
    %v1854 = vsel %vm84, %v1846, %v1852
    %v1856 = vrot.slane %v1854, 7
    %vm1858 = vcmask 1040384
    %v1859 = vsel %vm1858, %v1627, %v1856
    %v1860 = vld [vmem:[%s11] sm:$0xff]
    %v1861 = vld [vmem:[%s11 + $0x8] sm:$0xff]
    %v1862 = vld [vmem:[%s11 + $0x10] sm:$0xff]
    %v1863 = vld [vmem:[%s11 + $0x18] sm:$0xff]
    %v1864 = vld [vmem:[%s11 + $0x20] sm:$0xff]
    %v1865 = vld [vmem:[%s11 + $0x28] sm:$0xff]
    %v1866 = vld [vmem:[%s11 + $0x30] sm:$0xff]
    %v1867 = vld [vmem:[%s11 + $0x38] sm:$0xff]
    %v1868 = vld [vmem:[%s11 + $0x40] sm:$0xff]
    %v1869 = vld [vmem:[%s11 + $0x48] sm:$0xff]
    %v1870 = vld [vmem:[%s11 + $0x50] sm:$0xff]
    %v1871 = vld [vmem:[%s11 + $0x58] sm:$0xff]
    %v1872 = vld [vmem:[%s11 + $0x60] sm:$0xff]
    %v1873 = vld [vmem:[%s11 + $0x68] sm:$0xff]
    %v1874 = vld [vmem:[%s11 + $0x70] sm:$0xff]
    %v1875 = vld [vmem:[%s11 + $0x78] sm:$0xff]
    %v1876 = vld [vmem:[%s12] sm:$0xff]
    %v1877 = vld [vmem:[%s12 + $0x8] sm:$0xff]
    %v1878 = vld [vmem:[%s12 + $0x10] sm:$0xff]
    %v1879 = vld [vmem:[%s12 + $0x18] sm:$0xff]
    %v1880 = vld [vmem:[%s12 + $0x20] sm:$0xff]
    %v1881 = vld [vmem:[%s12 + $0x28] sm:$0xff]
    %v1882 = vld [vmem:[%s12 + $0x30] sm:$0xff]
    %v1883 = vld [vmem:[%s12 + $0x38] sm:$0xff]
    %1884 = vmatprep.subr.mxu0 0.0
    %1885 = vmatpush1.msra.mxu0 %v1876
    %1886 = vmatprep.subr.mxu0 0.0
    %1887 = vmatpush1.msra.mxu0 %v1877
    %1888 = vmatprep.subr.mxu0 0.0
    %1889 = vmatpush1.msra.mxu0 %v1878
    %1890 = vmatprep.subr.mxu0 0.0
    %1891 = vmatpush1.msra.mxu0 %v1879
    %1892 = vmatprep.subr.mxu0 0.0
    %1893 = vmatpush1.msra.mxu0 %v1880
    %1894 = vmatprep.subr.mxu0 0.0
    %1895 = vmatpush1.msra.mxu0 %v1881
    %1896 = vmatprep.subr.mxu0 0.0
    %1897 = vmatpush1.msra.mxu0 %v1882
    %1898 = vmatprep.subr.mxu0 0.0
    %1899 = vmatpush1.msra.mxu0 %v1883
    %1900 = vmatprep.subr.mxu0 0.0
    %1901 = vmatpush1.msra.mxu0 0.0
    %1902 = vmatprep.subr.mxu0 0.0
    %1903 = vmatpush1.msra.mxu0 0.0
    %1904 = vmatprep.subr.mxu0 0.0
    %1905 = vmatpush1.msra.mxu0 0.0
    %1906 = vmatprep.subr.mxu0 0.0
    %1907 = vmatpush1.msra.mxu0 0.0
    %1908 = vmatprep.subr.mxu0 0.0
    %1909 = vmatpush1.msra.mxu0 0.0
    %1910 = vmatprep.subr.mxu0 0.0
    %1911 = vmatpush1.msra.mxu0 0.0
    %1912 = vmatprep.subr.mxu0 0.0
    %1913 = vmatpush1.msra.mxu0 0.0
    %1914 = vmatprep.subr.mxu0 0.0
    %1915 = vmatpush1.msra.mxu0 0.0
    %1916 = vmatprep.subr.mxu0 0.0
    %1917 = vmatpush1.msra.mxu0 0.0
    %1918 = vmatprep.subr.mxu0 0.0
    %1919 = vmatpush1.msra.mxu0 0.0
    %1920 = vmatprep.subr.mxu0 0.0
    %1921 = vmatpush1.msra.mxu0 0.0
    %1922 = vmatprep.subr.mxu0 0.0
    %1923 = vmatpush1.msra.mxu0 0.0
    %1924 = vmatprep.subr.mxu0 0.0
    %1925 = vmatpush1.msra.mxu0 0.0
    %1926 = vmatprep.subr.mxu0 0.0
    %1927 = vmatpush1.msra.mxu0 0.0
    %1928 = vmatprep.subr.mxu0 0.0
    %1929 = vmatpush1.msra.mxu0 0.0
    %1930 = vmatprep.subr.mxu0 0.0
    %1931 = vmatpush1.msra.mxu0 0.0
    %1932 = vmatprep.subr.mxu0 0.0
    %1933 = vmatpush1.msra.mxu0 0.0
    %1934 = vmatprep.subr.mxu0 0.0
    %1935 = vmatpush1.msra.mxu0 0.0
    %1936 = vmatprep.subr.mxu0 0.0
    %1937 = vmatpush1.msra.mxu0 0.0
    %1938 = vmatprep.subr.mxu0 0.0
    %1939 = vmatpush1.msra.mxu0 0.0
    %1940 = vmatprep.subr.mxu0 0.0
    %1941 = vmatpush1.msra.mxu0 0.0
    %1942 = vmatprep.subr.mxu0 0.0
    %1943 = vmatpush1.msra.mxu0 0.0
    %1944 = vmatprep.subr.mxu0 0.0
    %1945 = vmatpush1.msra.mxu0 0.0
    %1946 = vmatprep.subr.mxu0 0.0
    %1947 = vmatpush1.msra.mxu0 0.0
    %1948 = vmatprep.mubr.f32.mxu0 0.0
    %1949 = vmatmul.mubr.f32.gmra.mrb[0].mxu0 %v1315
    %v1950 = vpop.f32.mrb[0].mxu0
    %v1951 = vadd.f32 0.0, %v1950
    %v1952 = vpop.f32.mrb[0].mxu0
    %1953 = vdwg.mxu0
    %1954 = vmatprep.subr.mxu0 0.0
    %1955 = vmatpush1.msra.mxu0 %v1860
    %1956 = vmatprep.subr.mxu0 0.0
    %1957 = vmatpush1.msra.mxu0 %v1861
    %1958 = vmatprep.subr.mxu0 0.0
    %1959 = vmatpush1.msra.mxu0 %v1862
    %1960 = vmatprep.subr.mxu0 0.0
    %1961 = vmatpush1.msra.mxu0 %v1863
    %1962 = vmatprep.subr.mxu0 0.0
    %1963 = vmatpush1.msra.mxu0 %v1864
    %1964 = vmatprep.subr.mxu0 0.0
    %1965 = vmatpush1.msra.mxu0 %v1865
    %1966 = vmatprep.subr.mxu0 0.0
    %1967 = vmatpush1.msra.mxu0 %v1866
    %1968 = vmatprep.subr.mxu0 0.0
    %1969 = vmatpush1.msra.mxu0 %v1867
    %1970 = vmatprep.subr.mxu0 0.0
    %1971 = vmatpush1.msra.mxu0 %v1868
    %1972 = vmatprep.subr.mxu0 0.0
    %1973 = vmatpush1.msra.mxu0 %v1869
    %1974 = vmatprep.subr.mxu0 0.0
    %1975 = vmatpush1.msra.mxu0 %v1870
    %1976 = vmatprep.subr.mxu0 0.0
    %1977 = vmatpush1.msra.mxu0 %v1871
    %1978 = vmatprep.subr.mxu0 0.0
    %1979 = vmatpush1.msra.mxu0 %v1872
    %1980 = vmatprep.subr.mxu0 0.0
    %1981 = vmatpush1.msra.mxu0 %v1873
    %1982 = vmatprep.subr.mxu0 0.0
    %1983 = vmatpush1.msra.mxu0 %v1874
    %1984 = vmatprep.subr.mxu0 0.0
    %1985 = vmatpush1.msra.mxu0 %v1875
    %1986 = vmatprep.subr.mxu0 0.0
    %1987 = vmatpush1.msra.mxu0 0.0
    %1988 = vmatprep.subr.mxu0 0.0
    %1989 = vmatpush1.msra.mxu0 0.0
    %1990 = vmatprep.subr.mxu0 0.0
    %1991 = vmatpush1.msra.mxu0 0.0
    %1992 = vmatprep.subr.mxu0 0.0
    %1993 = vmatpush1.msra.mxu0 0.0
    %1994 = vmatprep.subr.mxu0 0.0
    %1995 = vmatpush1.msra.mxu0 0.0
    %1996 = vmatprep.subr.mxu0 0.0
    %1997 = vmatpush1.msra.mxu0 0.0
    %1998 = vmatprep.subr.mxu0 0.0
    %1999 = vmatpush1.msra.mxu0 0.0
    %2000 = vmatprep.subr.mxu0 0.0
    %2001 = vmatpush1.msra.mxu0 0.0
    %2002 = vmatprep.subr.mxu0 0.0
    %2003 = vmatpush1.msra.mxu0 0.0
    %2004 = vmatprep.subr.mxu0 0.0
    %2005 = vmatpush1.msra.mxu0 0.0
    %2006 = vmatprep.subr.mxu0 0.0
    %2007 = vmatpush1.msra.mxu0 0.0
    %2008 = vmatprep.subr.mxu0 0.0
    %2009 = vmatpush1.msra.mxu0 0.0
    %2010 = vmatprep.subr.mxu0 0.0
    %2011 = vmatpush1.msra.mxu0 0.0
    %2012 = vmatprep.subr.mxu0 0.0
    %2013 = vmatpush1.msra.mxu0 0.0
    %2014 = vmatprep.subr.mxu0 0.0
    %2015 = vmatpush1.msra.mxu0 0.0
    %2016 = vmatprep.subr.mxu0 0.0
    %2017 = vmatpush1.msra.mxu0 0.0
    %2018 = vmatprep.mubr.f32.mxu0 0.0
    %2019 = vmatmul.mubr.f32.gmra.mrb[0].mxu0 %v1859
    %v2020 = vpop.f32.mrb[0].mxu0
    %v2021 = vadd.f32 %v1951, %v2020
    %v2022 = vpop.f32.mrb[0].mxu0
    %2023 = vdwg.mxu0
    %v2024 = vld [vmem:[%s13] sm:$0x1]
    %v2026 = vlaneseq
    %v2027 = vshrl.u32 %v2026, 7
    %v2028 = vsub.s32 0, %v2027
    %v2029 = vrot.slane %v2024, %v2028
    %v2031 = vadd.f32 %v2021, %v2029
    %v2032 = vmax.f32 %v2031, 0.0
    %v2033 = vld [vmem:[%s14] sm:$0xff]
    %v2034 = vld [vmem:[%s14 + $0x8] sm:$0xff]
    %v2035 = vld [vmem:[%s14 + $0x10] sm:$0xff]
    %v2036 = vld [vmem:[%s14 + $0x18] sm:$0xff]
    %v2037 = vld [vmem:[%s14 + $0x20] sm:$0xff]
    %v2038 = vld [vmem:[%s14 + $0x28] sm:$0xff]
    %v2039 = vld [vmem:[%s14 + $0x30] sm:$0xff]
    %v2040 = vld [vmem:[%s14 + $0x38] sm:$0xff]
    %v2041 = vld [vmem:[%s14 + $0x40] sm:$0xff]
    %v2042 = vld [vmem:[%s14 + $0x48] sm:$0xff]
    %v2043 = vld [vmem:[%s14 + $0x50] sm:$0xff]
    %v2044 = vld [vmem:[%s14 + $0x58] sm:$0xff]
    %v2045 = vld [vmem:[%s14 + $0x60] sm:$0xff]
    %v2046 = vld [vmem:[%s14 + $0x68] sm:$0xff]
    %v2047 = vld [vmem:[%s14 + $0x70] sm:$0xff]
    %v2048 = vld [vmem:[%s14 + $0x78] sm:$0xff]
    %v2049 = vld [vmem:[%s15] sm:$0x1]
    %v2051 = vlaneseq
    %v2052 = vshrl.u32 %v2051, 7
    %v2053 = vsub.s32 0, %v2052
    %v2054 = vrot.slane %v2049, %v2053
    %2056 = vmatprep.subr.mxu0 0.0
    %2057 = vmatpush1.msra.mxu0 %v2033
    %2058 = vmatprep.subr.mxu0 0.0
    %2059 = vmatpush1.msra.mxu0 %v2034
    %2060 = vmatprep.subr.mxu0 0.0
    %2061 = vmatpush1.msra.mxu0 %v2035
    %2062 = vmatprep.subr.mxu0 0.0
    %2063 = vmatpush1.msra.mxu0 %v2036
    %2064 = vmatprep.subr.mxu0 0.0
    %2065 = vmatpush1.msra.mxu0 %v2037
    %2066 = vmatprep.subr.mxu0 0.0
    %2067 = vmatpush1.msra.mxu0 %v2038
    %2068 = vmatprep.subr.mxu0 0.0
    %2069 = vmatpush1.msra.mxu0 %v2039
    %2070 = vmatprep.subr.mxu0 0.0
    %2071 = vmatpush1.msra.mxu0 %v2040
    %2072 = vmatprep.subr.mxu0 0.0
    %2073 = vmatpush1.msra.mxu0 %v2041
    %2074 = vmatprep.subr.mxu0 0.0
    %2075 = vmatpush1.msra.mxu0 %v2042
    %2076 = vmatprep.subr.mxu0 0.0
    %2077 = vmatpush1.msra.mxu0 %v2043
    %2078 = vmatprep.subr.mxu0 0.0
    %2079 = vmatpush1.msra.mxu0 %v2044
    %2080 = vmatprep.subr.mxu0 0.0
    %2081 = vmatpush1.msra.mxu0 %v2045
    %2082 = vmatprep.subr.mxu0 0.0
    %2083 = vmatpush1.msra.mxu0 %v2046
    %2084 = vmatprep.subr.mxu0 0.0
    %2085 = vmatpush1.msra.mxu0 %v2047
    %2086 = vmatprep.subr.mxu0 0.0
    %2087 = vmatpush1.msra.mxu0 %v2048
    %2088 = vmatprep.subr.mxu0 0.0
    %2089 = vmatpush1.msra.mxu0 0.0
    %2090 = vmatprep.subr.mxu0 0.0
    %2091 = vmatpush1.msra.mxu0 0.0
    %2092 = vmatprep.subr.mxu0 0.0
    %2093 = vmatpush1.msra.mxu0 0.0
    %2094 = vmatprep.subr.mxu0 0.0
    %2095 = vmatpush1.msra.mxu0 0.0
    %2096 = vmatprep.subr.mxu0 0.0
    %2097 = vmatpush1.msra.mxu0 0.0
    %2098 = vmatprep.subr.mxu0 0.0
    %2099 = vmatpush1.msra.mxu0 0.0
    %2100 = vmatprep.subr.mxu0 0.0
    %2101 = vmatpush1.msra.mxu0 0.0
    %2102 = vmatprep.subr.mxu0 0.0
    %2103 = vmatpush1.msra.mxu0 0.0
    %2104 = vmatprep.subr.mxu0 0.0
    %2105 = vmatpush1.msra.mxu0 0.0
    %2106 = vmatprep.subr.mxu0 0.0
    %2107 = vmatpush1.msra.mxu0 0.0
    %2108 = vmatprep.subr.mxu0 0.0
    %2109 = vmatpush1.msra.mxu0 0.0
    %2110 = vmatprep.subr.mxu0 0.0
    %2111 = vmatpush1.msra.mxu0 0.0
    %2112 = vmatprep.subr.mxu0 0.0
    %2113 = vmatpush1.msra.mxu0 0.0
    %2114 = vmatprep.subr.mxu0 0.0
    %2115 = vmatpush1.msra.mxu0 0.0
    %2116 = vmatprep.subr.mxu0 0.0
    %2117 = vmatpush1.msra.mxu0 0.0
    %2118 = vmatprep.subr.mxu0 0.0
    %2119 = vmatpush1.msra.mxu0 0.0
    %2120 = vmatprep.mubr.f32.mxu0 0.0
    %2121 = vmatmul.mubr.f32.gmra.mrb[0].mxu0 %v2032
    %v2122 = vpop.f32.mrb[0].mxu0
    %v2123 = vadd.f32 %v2054, %v2122
    %v2124 = vpop.f32.mrb[0].mxu0
    %2125 = vdwg.mxu0
    %vm2126 = vcmask 517120
    %2127 = vst.msk [vmem:[#allocation2] sm:$0x3] %vm2126, %v2123
    // Predicated region
    $region66: #{stacked_attention_embedding.1} parent=1 // pred_check
      _
    $region67: #{stacked_attention_embedding.1} parent=1 // pred_check_branch
      %2129 = sbr.rel (0) target = $region69
    $region68: #{stacked_attention_embedding.1} parent=1 // pred_region
      %s2131 = ssub.s32 32, 32
      %2132 = vsyncadd [#allocation3], %s2131
      %s2134 = sshll.u32 [#allocation2], 4
      %s2135 = int_to_ptr.vmem [resolvable:$true] %s2134
      %2137 = dma.vmem_to_hbm [thread:$0]  %s2135, 32, %s16, [#allocation3]
    $region69: #{stacked_attention_embedding.1} parent=1 // pred_fallthru
      _
    // Predicated region
    $region70: #{stacked_attention_embedding.1} parent=1 // pred_check
      _
    $region71: #{stacked_attention_embedding.1} parent=1 // pred_check_branch
      %2139 = sbr.rel (0) target = $region73
    $region72: #{stacked_attention_embedding.1} parent=1 // pred_region
      %2140 = dma.done [#allocation3], 32
    $region73: #{stacked_attention_embedding.1} parent=1 // pred_fallthru
      _
    %2141 = vsyncpa [#allocation3], 1

</llo_original>
